<compile_context>
chip_gen: v7x
topology: tpu7x:2x2x1
jax: 0.10.0
libtpu: 0.0.40
codegen_flags: <defaults>
</compile_context>

<pallas_src>
import functools

import jax
import jax.numpy as jnp
from jax.experimental import pallas as pl
from jax.experimental.pallas import tpu as pltpu


COMPUTE_DTYPE = jnp.bfloat16


def gan_kernel(
    noise_ref,
    # generator params: noise_dim -> H -> 2H -> 4H -> data_dim
    gw1, gb1, gw2, gb2, gw3, gb3, gw4, gb4,
    # discriminator params: data_dim -> 4H -> 2H -> H -> 1
    dw1, db1, dw2, db2, dw3, db3, dw4_row, db4,
    out_ref,
):
    def linear_relu(x, w_ref, b_ref):
        y = jnp.dot(x, w_ref[...], preferred_element_type=jnp.float32) + b_ref[...]
        return jnp.maximum(y, 0.0).astype(COMPUTE_DTYPE)

    x = noise_ref[...].astype(COMPUTE_DTYPE)

    # --- Generator (last layer has no activation) ---
    h = linear_relu(x, gw1, gb1)
    h = linear_relu(h, gw2, gb2)
    h = linear_relu(h, gw3, gb3)
    generated = (
        jnp.dot(h, gw4[...], preferred_element_type=jnp.float32) + gb4[...]
    ).astype(COMPUTE_DTYPE)

    # --- Discriminator ---
    d = linear_relu(generated, dw1, db1)
    d = linear_relu(d, dw2, db2)
    d = linear_relu(d, dw3, db3)

    # Final (hidden -> 1) layer, lane-dense: contract the hidden axis of both
    # operands so the result is (1, tile_b) with batch on the lane axis.
    logit = jax.lax.dot_general(
        dw4_row[...], d,
        dimension_numbers=(((1,), (1,)), ((), ())),
        preferred_element_type=jnp.float32,
    ) + db4[...]                                            # (1, tile_b) f32

    # sigmoid(x) = 1 / (1 + exp(-x)); exp and approx reciprocal run on the EUP.
    out_ref[...] = pl.reciprocal(1.0 + jnp.exp(-logit), approx=True).astype(
        out_ref.dtype
    )


def _round_up(x, m):
    return (x + m - 1) // m * m


def init_linear_params(key, in_dim, out_dim):
    """PyTorch-style uniform(+/- 1/sqrt(in)) init; weight stored (in, out) bf16."""
    kw, kb = jax.random.split(key)
    bound = 1.0 / float(in_dim) ** 0.5
    w = jax.random.uniform(kw, (in_dim, out_dim), jnp.float32, -bound, bound)
    b = jax.random.uniform(kb, (1, out_dim), jnp.float32, -bound, bound)
    return w.astype(COMPUTE_DTYPE), b


def make_gan_params(key, noise_dim, data_dim, hidden_dim):
    dims = [
        # generator
        (noise_dim, hidden_dim),
        (hidden_dim, hidden_dim * 2),
        (hidden_dim * 2, hidden_dim * 4),
        (hidden_dim * 4, data_dim),
        # discriminator (all but the final hidden -> 1 layer)
        (data_dim, hidden_dim * 4),
        (hidden_dim * 4, hidden_dim * 2),
        (hidden_dim * 2, hidden_dim),
    ]
    keys = jax.random.split(key, len(dims) + 1)
    params = []
    for k, (di, do) in zip(keys[:-1], dims):
        w, b = init_linear_params(k, di, do)
        params.extend([w, b])
    # Final discriminator layer (hidden_dim -> 1): weight kept as a (1, hidden_dim)
    # bf16 row for the in-kernel lane-dense M=1 matmul; bias (1, 1) f32.
    kw, kb = jax.random.split(keys[-1])
    bound = 1.0 / float(hidden_dim) ** 0.5
    dw4_row = jax.random.uniform(kw, (1, hidden_dim), jnp.float32, -bound, bound)
    db4 = jax.random.uniform(kb, (1, 1), jnp.float32, -bound, bound)
    params.extend([dw4_row.astype(COMPUTE_DTYPE), db4])
    return params  # 16 arrays: gw1,gb1,...,dw4_row,db4


@functools.partial(jax.jit, static_argnames=("tile_b",))
def gan_forward(noise, params, *, tile_b=512):
    batch, noise_dim = noise.shape

    padded16 = _round_up(batch, 16)  # bf16 sublane packing
    if padded16 < 256:
        # Small batch: one full-extent tile (all blocks equal their array dims).
        tile_b = padded16
    else:
        # Large batch: at least 2 grid steps (keeps both v7x TensorCores busy) and
        # tile_b a multiple of 128 so the lane-dense (1, tile_b) output block is a
        # full, unmasked lane slab.
        half = -(-padded16 // 2)
        tile_b = min(int(tile_b), _round_up(half, 128))
        tile_b = _round_up(max(tile_b, 128), 128)
    padded = _round_up(batch, tile_b)
    if padded != batch:
        noise = jnp.pad(noise, ((0, padded - batch), (0, 0)))
    grid = (padded // tile_b,)

    # Input specs: batch-tiled noise + VMEM-resident weights/biases (constant
    # block (0, 0) across the whole grid, so they are fetched once and reused).
    in_specs = [pl.BlockSpec((tile_b, noise_dim), lambda i: (i, 0))]
    in_specs += [pl.BlockSpec(p.shape, lambda i: (0, 0)) for p in params]
    # Lane-dense output: a single (1, padded) f32 row, tiled (1, tile_b) per step.
    out_specs = pl.BlockSpec((1, tile_b), lambda i: (0, i))

    # Advisory cost estimate for the XLA scheduler.
    weight_sizes = sum(int(p.size) for p in params[0::2])
    cost = pl.CostEstimate(
        flops=2 * padded * weight_sizes,
        transcendentals=2 * padded,
        bytes_accessed=(
            sum(int(p.size) * p.dtype.itemsize for p in params)
            + int(noise.size) * noise.dtype.itemsize
            + padded * 4
        ),
    )

    out = pl.pallas_call(
        gan_kernel,
        out_shape=jax.ShapeDtypeStruct((1, padded), jnp.float32),
        grid=grid,
        in_specs=in_specs,
        out_specs=out_specs,
        compiler_params=pltpu.CompilerParams(
            dimension_semantics=("parallel",),
            vmem_limit_bytes=32 * 1024 * 1024,
        ),
        cost_estimate=cost,
    )(noise, *params)

    return out[0, :batch].reshape(batch, 1)


def ref_forward(noise, params):
    """Pure-JAX reference of the same (bf16 weights / f32 accumulation) math."""
    (gw1, gb1, gw2, gb2, gw3, gb3, gw4, gb4,
     dw1, db1, dw2, db2, dw3, db3, dw4_row, db4) = params

    def lin(x, w, b):
        return jnp.dot(x, w, preferred_element_type=jnp.float32) + b

    def lin_relu(x, w, b):
        return jnp.maximum(lin(x, w, b), 0.0).astype(COMPUTE_DTYPE)

    x = noise.astype(COMPUTE_DTYPE)
    h = lin_relu(x, gw1, gb1)
    h = lin_relu(h, gw2, gb2)
    h = lin_relu(h, gw3, gb3)
    g = lin(h, gw4, gb4).astype(COMPUTE_DTYPE)
    d = lin_relu(g, dw1, db1)
    d = lin_relu(d, dw2, db2)
    d = lin_relu(d, dw3, db3)
    logit = jnp.dot(d, dw4_row.T, preferred_element_type=jnp.float32) + db4
    return jax.nn.sigmoid(logit)


if __name__ == "__main__":
    noise_dim = 32
    data_dim = 64
    hidden_dim = 128
    batch = 8

    key = jax.random.PRNGKey(0)
    k_noise, k_params = jax.random.split(key)

    noise = jax.random.normal(k_noise, (batch, noise_dim), jnp.float32)
    params = make_gan_params(k_params, noise_dim, data_dim, hidden_dim)

    out = jax.block_until_ready(gan_forward(noise, params))
    ref = jax.block_until_ready(ref_forward(noise, params))

    assert out.shape == (batch, 1), out.shape
    # bf16 weights + approx reciprocal in the sigmoid -> loosened tolerance.
    assert jnp.allclose(out, ref, atol=2e-2, rtol=2e-2), (out, ref)

    print("KERNEL_OK")
</pallas_src>

<mosaic_0001>
module attributes {stable_mosaic.version = 11 : i64} {
  func.func @gan_kernel(%arg0: i32, %arg1: memref<16x32xf32, #tpu.memory_space<vmem>>, %arg2: memref<32x128xbf16, #tpu.memory_space<vmem>>, %arg3: memref<1x128xf32, #tpu.memory_space<vmem>>, %arg4: memref<128x256xbf16, #tpu.memory_space<vmem>>, %arg5: memref<1x256xf32, #tpu.memory_space<vmem>>, %arg6: memref<256x512xbf16, #tpu.memory_space<vmem>>, %arg7: memref<1x512xf32, #tpu.memory_space<vmem>>, %arg8: memref<512x64xbf16, #tpu.memory_space<vmem>>, %arg9: memref<1x64xf32, #tpu.memory_space<vmem>>, %arg10: memref<64x512xbf16, #tpu.memory_space<vmem>>, %arg11: memref<1x512xf32, #tpu.memory_space<vmem>>, %arg12: memref<512x256xbf16, #tpu.memory_space<vmem>>, %arg13: memref<1x256xf32, #tpu.memory_space<vmem>>, %arg14: memref<256x128xbf16, #tpu.memory_space<vmem>>, %arg15: memref<1x128xf32, #tpu.memory_space<vmem>>, %arg16: memref<1x128xbf16, #tpu.memory_space<vmem>>, %arg17: memref<1x1xf32, #tpu.memory_space<vmem>>, %arg18: memref<1x16xf32, #tpu.memory_space<vmem>>) attributes {dimension_semantics = [#tpu.dimension_semantics<parallel>], iteration_bounds = array<i64: 1>, scalar_prefetch = 0 : i64, scratch_operands = 0 : i64, tpu.core_type = #tpu.core_type<tc>, window_params = [{transform_indices = @transform_0, window_bounds = array<i64: 16, 32>}, {pipeline_mode = #tpu.pipeline_mode<synchronous>, transform_indices = @transform_1, window_bounds = array<i64: 32, 128>}, {pipeline_mode = #tpu.pipeline_mode<synchronous>, transform_indices = @transform_2, window_bounds = array<i64: 1, 128>}, {pipeline_mode = #tpu.pipeline_mode<synchronous>, transform_indices = @transform_3, window_bounds = array<i64: 128, 256>}, {pipeline_mode = #tpu.pipeline_mode<synchronous>, transform_indices = @transform_4, window_bounds = array<i64: 1, 256>}, {pipeline_mode = #tpu.pipeline_mode<synchronous>, transform_indices = @transform_5, window_bounds = array<i64: 256, 512>}, {pipeline_mode = #tpu.pipeline_mode<synchronous>, transform_indices = @transform_6, window_bounds = array<i64: 1, 512>}, {pipeline_mode = #tpu.pipeline_mode<synchronous>, transform_indices = @transform_7, window_bounds = array<i64: 512, 64>}, {pipeline_mode = #tpu.pipeline_mode<synchronous>, transform_indices = @transform_8, window_bounds = array<i64: 1, 64>}, {pipeline_mode = #tpu.pipeline_mode<synchronous>, transform_indices = @transform_9, window_bounds = array<i64: 64, 512>}, {pipeline_mode = #tpu.pipeline_mode<synchronous>, transform_indices = @transform_10, window_bounds = array<i64: 1, 512>}, {pipeline_mode = #tpu.pipeline_mode<synchronous>, transform_indices = @transform_11, window_bounds = array<i64: 512, 256>}, {pipeline_mode = #tpu.pipeline_mode<synchronous>, transform_indices = @transform_12, window_bounds = array<i64: 1, 256>}, {pipeline_mode = #tpu.pipeline_mode<synchronous>, transform_indices = @transform_13, window_bounds = array<i64: 256, 128>}, {pipeline_mode = #tpu.pipeline_mode<synchronous>, transform_indices = @transform_14, window_bounds = array<i64: 1, 128>}, {pipeline_mode = #tpu.pipeline_mode<synchronous>, transform_indices = @transform_15, window_bounds = array<i64: 1, 128>}, {pipeline_mode = #tpu.pipeline_mode<synchronous>, transform_indices = @transform_16, window_bounds = array<i64: 1, 1>}, {transform_indices = @transform_17, window_bounds = array<i64: 1, 16>}]} {
    %c0 = arith.constant 0 : index
    %c0_0 = arith.constant 0 : index
    %0 = vector.load %arg1[%c0, %c0_0] : memref<16x32xf32, #tpu.memory_space<vmem>>, vector<16x32xf32>
    %1 = arith.truncf %0 : vector<16x32xf32> to vector<16x32xbf16>
    %c0_1 = arith.constant 0 : index
    %c0_2 = arith.constant 0 : index
    %2 = vector.load %arg2[%c0_1, %c0_2] : memref<32x128xbf16, #tpu.memory_space<vmem>>, vector<32x128xbf16>
    %cst = arith.constant dense<0.000000e+00> : vector<16x128xf32>
    %3 = tpu.matmul %1, %2, %cst {dimension_numbers = #tpu.dot_dimension_numbers<[1], [0], [0], [1], [0, 0, 1, 1], [], []>} : vector<16x32xbf16>, vector<32x128xbf16>, vector<16x128xf32> -> vector<16x128xf32>
    %c0_3 = arith.constant 0 : index
    %c0_4 = arith.constant 0 : index
    %4 = vector.load %arg3[%c0_3, %c0_4] : memref<1x128xf32, #tpu.memory_space<vmem>>, vector<1x128xf32>
    %5 = vector.broadcast %4 : vector<1x128xf32> to vector<16x128xf32>
    %6 = arith.addf %3, %5 : vector<16x128xf32>
    %cst_5 = arith.constant 0.000000e+00 : f32
    %7 = vector.broadcast %cst_5 : f32 to vector<16x128xf32>
    %8 = arith.maximumf %6, %7 : vector<16x128xf32>
    %9 = arith.truncf %8 : vector<16x128xf32> to vector<16x128xbf16>
    %c0_6 = arith.constant 0 : index
    %c0_7 = arith.constant 0 : index
    %10 = vector.load %arg4[%c0_6, %c0_7] : memref<128x256xbf16, #tpu.memory_space<vmem>>, vector<128x256xbf16>
    %cst_8 = arith.constant dense<0.000000e+00> : vector<16x256xf32>
    %11 = tpu.matmul %9, %10, %cst_8 {dimension_numbers = #tpu.dot_dimension_numbers<[1], [0], [0], [1], [0, 0, 1, 1], [], []>} : vector<16x128xbf16>, vector<128x256xbf16>, vector<16x256xf32> -> vector<16x256xf32>
    %c0_9 = arith.constant 0 : index
    %c0_10 = arith.constant 0 : index
    %12 = vector.load %arg5[%c0_9, %c0_10] : memref<1x256xf32, #tpu.memory_space<vmem>>, vector<1x256xf32>
    %13 = vector.broadcast %12 : vector<1x256xf32> to vector<16x256xf32>
    %14 = arith.addf %11, %13 : vector<16x256xf32>
    %cst_11 = arith.constant 0.000000e+00 : f32
    %15 = vector.broadcast %cst_11 : f32 to vector<16x256xf32>
    %16 = arith.maximumf %14, %15 : vector<16x256xf32>
    %17 = arith.truncf %16 : vector<16x256xf32> to vector<16x256xbf16>
    %c0_12 = arith.constant 0 : index
    %c0_13 = arith.constant 0 : index
    %18 = vector.load %arg6[%c0_12, %c0_13] : memref<256x512xbf16, #tpu.memory_space<vmem>>, vector<256x512xbf16>
    %cst_14 = arith.constant dense<0.000000e+00> : vector<16x512xf32>
    %19 = tpu.matmul %17, %18, %cst_14 {dimension_numbers = #tpu.dot_dimension_numbers<[1], [0], [0], [1], [0, 0, 1, 1], [], []>} : vector<16x256xbf16>, vector<256x512xbf16>, vector<16x512xf32> -> vector<16x512xf32>
    %c0_15 = arith.constant 0 : index
    %c0_16 = arith.constant 0 : index
    %20 = vector.load %arg7[%c0_15, %c0_16] : memref<1x512xf32, #tpu.memory_space<vmem>>, vector<1x512xf32>
    %21 = vector.broadcast %20 : vector<1x512xf32> to vector<16x512xf32>
    %22 = arith.addf %19, %21 : vector<16x512xf32>
    %cst_17 = arith.constant 0.000000e+00 : f32
    %23 = vector.broadcast %cst_17 : f32 to vector<16x512xf32>
    %24 = arith.maximumf %22, %23 : vector<16x512xf32>
    %25 = arith.truncf %24 : vector<16x512xf32> to vector<16x512xbf16>
    %c0_18 = arith.constant 0 : index
    %c0_19 = arith.constant 0 : index
    %26 = vector.load %arg8[%c0_18, %c0_19] : memref<512x64xbf16, #tpu.memory_space<vmem>>, vector<512x64xbf16>
    %cst_20 = arith.constant dense<0.000000e+00> : vector<16x64xf32>
    %27 = tpu.matmul %25, %26, %cst_20 {dimension_numbers = #tpu.dot_dimension_numbers<[1], [0], [0], [1], [0, 0, 1, 1], [], []>} : vector<16x512xbf16>, vector<512x64xbf16>, vector<16x64xf32> -> vector<16x64xf32>
    %c0_21 = arith.constant 0 : index
    %c0_22 = arith.constant 0 : index
    %28 = vector.load %arg9[%c0_21, %c0_22] : memref<1x64xf32, #tpu.memory_space<vmem>>, vector<1x64xf32>
    %29 = vector.broadcast %28 : vector<1x64xf32> to vector<16x64xf32>
    %30 = arith.addf %27, %29 : vector<16x64xf32>
    %31 = arith.truncf %30 : vector<16x64xf32> to vector<16x64xbf16>
    %c0_23 = arith.constant 0 : index
    %c0_24 = arith.constant 0 : index
    %32 = vector.load %arg10[%c0_23, %c0_24] : memref<64x512xbf16, #tpu.memory_space<vmem>>, vector<64x512xbf16>
    %cst_25 = arith.constant dense<0.000000e+00> : vector<16x512xf32>
    %33 = tpu.matmul %31, %32, %cst_25 {dimension_numbers = #tpu.dot_dimension_numbers<[1], [0], [0], [1], [0, 0, 1, 1], [], []>} : vector<16x64xbf16>, vector<64x512xbf16>, vector<16x512xf32> -> vector<16x512xf32>
    %c0_26 = arith.constant 0 : index
    %c0_27 = arith.constant 0 : index
    %34 = vector.load %arg11[%c0_26, %c0_27] : memref<1x512xf32, #tpu.memory_space<vmem>>, vector<1x512xf32>
    %35 = vector.broadcast %34 : vector<1x512xf32> to vector<16x512xf32>
    %36 = arith.addf %33, %35 : vector<16x512xf32>
    %cst_28 = arith.constant 0.000000e+00 : f32
    %37 = vector.broadcast %cst_28 : f32 to vector<16x512xf32>
    %38 = arith.maximumf %36, %37 : vector<16x512xf32>
    %39 = arith.truncf %38 : vector<16x512xf32> to vector<16x512xbf16>
    %c0_29 = arith.constant 0 : index
    %c0_30 = arith.constant 0 : index
    %40 = vector.load %arg12[%c0_29, %c0_30] : memref<512x256xbf16, #tpu.memory_space<vmem>>, vector<512x256xbf16>
    %cst_31 = arith.constant dense<0.000000e+00> : vector<16x256xf32>
    %41 = tpu.matmul %39, %40, %cst_31 {dimension_numbers = #tpu.dot_dimension_numbers<[1], [0], [0], [1], [0, 0, 1, 1], [], []>} : vector<16x512xbf16>, vector<512x256xbf16>, vector<16x256xf32> -> vector<16x256xf32>
    %c0_32 = arith.constant 0 : index
    %c0_33 = arith.constant 0 : index
    %42 = vector.load %arg13[%c0_32, %c0_33] : memref<1x256xf32, #tpu.memory_space<vmem>>, vector<1x256xf32>
    %43 = vector.broadcast %42 : vector<1x256xf32> to vector<16x256xf32>
    %44 = arith.addf %41, %43 : vector<16x256xf32>
    %cst_34 = arith.constant 0.000000e+00 : f32
    %45 = vector.broadcast %cst_34 : f32 to vector<16x256xf32>
    %46 = arith.maximumf %44, %45 : vector<16x256xf32>
    %47 = arith.truncf %46 : vector<16x256xf32> to vector<16x256xbf16>
    %c0_35 = arith.constant 0 : index
    %c0_36 = arith.constant 0 : index
    %48 = vector.load %arg14[%c0_35, %c0_36] : memref<256x128xbf16, #tpu.memory_space<vmem>>, vector<256x128xbf16>
    %cst_37 = arith.constant dense<0.000000e+00> : vector<16x128xf32>
    %49 = tpu.matmul %47, %48, %cst_37 {dimension_numbers = #tpu.dot_dimension_numbers<[1], [0], [0], [1], [0, 0, 1, 1], [], []>} : vector<16x256xbf16>, vector<256x128xbf16>, vector<16x128xf32> -> vector<16x128xf32>
    %c0_38 = arith.constant 0 : index
    %c0_39 = arith.constant 0 : index
    %50 = vector.load %arg15[%c0_38, %c0_39] : memref<1x128xf32, #tpu.memory_space<vmem>>, vector<1x128xf32>
    %51 = vector.broadcast %50 : vector<1x128xf32> to vector<16x128xf32>
    %52 = arith.addf %49, %51 : vector<16x128xf32>
    %cst_40 = arith.constant 0.000000e+00 : f32
    %53 = vector.broadcast %cst_40 : f32 to vector<16x128xf32>
    %54 = arith.maximumf %52, %53 : vector<16x128xf32>
    %55 = arith.truncf %54 : vector<16x128xf32> to vector<16x128xbf16>
    %c0_41 = arith.constant 0 : index
    %c0_42 = arith.constant 0 : index
    %56 = vector.load %arg16[%c0_41, %c0_42] : memref<1x128xbf16, #tpu.memory_space<vmem>>, vector<1x128xbf16>
    %cst_43 = arith.constant dense<0.000000e+00> : vector<1x16xf32>
    %57 = tpu.matmul %56, %55, %cst_43 {dimension_numbers = #tpu.dot_dimension_numbers<[1], [1], [0], [0], [0, 0, 1, 0], [], []>} : vector<1x128xbf16>, vector<16x128xbf16>, vector<1x16xf32> -> vector<1x16xf32>
    %c0_44 = arith.constant 0 : index
    %c0_45 = arith.constant 0 : index
    %58 = vector.load %arg17[%c0_44, %c0_45] : memref<1x1xf32, #tpu.memory_space<vmem>>, vector<1x1xf32>
    %59 = vector.broadcast %58 : vector<1x1xf32> to vector<1x16xf32>
    %60 = arith.addf %57, %59 : vector<1x16xf32>
    %cst_46 = arith.constant 0.000000e+00 : f32
    %61 = vector.broadcast %cst_46 : f32 to vector<1x16xf32>
    %62 = arith.subf %61, %60 : vector<1x16xf32>
    %63 = math.exp %62 : vector<1x16xf32>
    %cst_47 = arith.constant 1.000000e+00 : f32
    %64 = vector.broadcast %cst_47 : f32 to vector<1x16xf32>
    %65 = arith.addf %64, %63 : vector<1x16xf32>
    %66 = tpu.reciprocal %65 {approx = true} : vector<1x16xf32> -> vector<1x16xf32>
    %c0_48 = arith.constant 0 : index
    %c0_49 = arith.constant 0 : index
    %67 = vector.load %arg18[%c0_48, %c0_49] : memref<1x16xf32, #tpu.memory_space<vmem>>, vector<1x16xf32>
    tpu.vector_store %arg18[%c0_48, %c0_49], %66 {strides = array<i32>} : memref<1x16xf32, #tpu.memory_space<vmem>>, vector<1x16xf32>,
    return
  }
  func.func @transform_0(%arg0: i32) -> (i32, i32) {
    %c0_i32 = arith.constant 0 : i32
    %c0_i32_0 = arith.constant 0 : i32
    return %arg0, %c0_i32 : i32, i32
  }
  func.func @transform_1(%arg0: i32) -> (i32, i32) {
    %c0_i32 = arith.constant 0 : i32
    %c0_i32_0 = arith.constant 0 : i32
    %c0_i32_1 = arith.constant 0 : i32
    return %c0_i32, %c0_i32_0 : i32, i32
  }
  func.func @transform_2(%arg0: i32) -> (i32, i32) {
    %c0_i32 = arith.constant 0 : i32
    %c0_i32_0 = arith.constant 0 : i32
    %c0_i32_1 = arith.constant 0 : i32
    return %c0_i32, %c0_i32_0 : i32, i32
  }
  func.func @transform_3(%arg0: i32) -> (i32, i32) {
    %c0_i32 = arith.constant 0 : i32
    %c0_i32_0 = arith.constant 0 : i32
    %c0_i32_1 = arith.constant 0 : i32
    return %c0_i32, %c0_i32_0 : i32, i32
  }
  func.func @transform_4(%arg0: i32) -> (i32, i32) {
    %c0_i32 = arith.constant 0 : i32
    %c0_i32_0 = arith.constant 0 : i32
    %c0_i32_1 = arith.constant 0 : i32
    return %c0_i32, %c0_i32_0 : i32, i32
  }
  func.func @transform_5(%arg0: i32) -> (i32, i32) {
    %c0_i32 = arith.constant 0 : i32
    %c0_i32_0 = arith.constant 0 : i32
    %c0_i32_1 = arith.constant 0 : i32
    return %c0_i32, %c0_i32_0 : i32, i32
  }
  func.func @transform_6(%arg0: i32) -> (i32, i32) {
    %c0_i32 = arith.constant 0 : i32
    %c0_i32_0 = arith.constant 0 : i32
    %c0_i32_1 = arith.constant 0 : i32
    return %c0_i32, %c0_i32_0 : i32, i32
  }
  func.func @transform_7(%arg0: i32) -> (i32, i32) {
    %c0_i32 = arith.constant 0 : i32
    %c0_i32_0 = arith.constant 0 : i32
    %c0_i32_1 = arith.constant 0 : i32
    return %c0_i32, %c0_i32_0 : i32, i32
  }
  func.func @transform_8(%arg0: i32) -> (i32, i32) {
    %c0_i32 = arith.constant 0 : i32
    %c0_i32_0 = arith.constant 0 : i32
    %c0_i32_1 = arith.constant 0 : i32
    return %c0_i32, %c0_i32_0 : i32, i32
  }
  func.func @transform_9(%arg0: i32) -> (i32, i32) {
    %c0_i32 = arith.constant 0 : i32
    %c0_i32_0 = arith.constant 0 : i32
    %c0_i32_1 = arith.constant 0 : i32
    return %c0_i32, %c0_i32_0 : i32, i32
  }
  func.func @transform_10(%arg0: i32) -> (i32, i32) {
    %c0_i32 = arith.constant 0 : i32
    %c0_i32_0 = arith.constant 0 : i32
    %c0_i32_1 = arith.constant 0 : i32
    return %c0_i32, %c0_i32_0 : i32, i32
  }
  func.func @transform_11(%arg0: i32) -> (i32, i32) {
    %c0_i32 = arith.constant 0 : i32
    %c0_i32_0 = arith.constant 0 : i32
    %c0_i32_1 = arith.constant 0 : i32
    return %c0_i32, %c0_i32_0 : i32, i32
  }
  func.func @transform_12(%arg0: i32) -> (i32, i32) {
    %c0_i32 = arith.constant 0 : i32
    %c0_i32_0 = arith.constant 0 : i32
    %c0_i32_1 = arith.constant 0 : i32
    return %c0_i32, %c0_i32_0 : i32, i32
  }
  func.func @transform_13(%arg0: i32) -> (i32, i32) {
    %c0_i32 = arith.constant 0 : i32
    %c0_i32_0 = arith.constant 0 : i32
    %c0_i32_1 = arith.constant 0 : i32
    return %c0_i32, %c0_i32_0 : i32, i32
  }
  func.func @transform_14(%arg0: i32) -> (i32, i32) {
    %c0_i32 = arith.constant 0 : i32
    %c0_i32_0 = arith.constant 0 : i32
    %c0_i32_1 = arith.constant 0 : i32
    return %c0_i32, %c0_i32_0 : i32, i32
  }
  func.func @transform_15(%arg0: i32) -> (i32, i32) {
    %c0_i32 = arith.constant 0 : i32
    %c0_i32_0 = arith.constant 0 : i32
    %c0_i32_1 = arith.constant 0 : i32
    return %c0_i32, %c0_i32_0 : i32, i32
  }
  func.func @transform_16(%arg0: i32) -> (i32, i32) {
    %c0_i32 = arith.constant 0 : i32
    %c0_i32_0 = arith.constant 0 : i32
    %c0_i32_1 = arith.constant 0 : i32
    return %c0_i32, %c0_i32_0 : i32, i32
  }
  func.func @transform_17(%arg0: i32) -> (i32, i32) {
    %c0_i32 = arith.constant 0 : i32
    %c0_i32_0 = arith.constant 0 : i32
    return %c0_i32, %arg0 : i32, i32
  }
}

</mosaic_0001>

<llo_original>
// kernel: gan_forward.1
$region0: #{gan_forward.1}
  #allocation0 [shape = 'u32[]', space=smem, size = 0x4, offset = 0x4, fixed_abs, tag = 'smem constant byte address 0x4 - core index']
  #allocation1 [shape = 'u32[144,128]{1,0:T(1,128)}', space=vmem, size = 0x12000, scoped, tag = 'internal scratch']
  #allocation2 [shape = 'f32[1,1]{1,0:T(1,128)S(1)}', space=vmem, size = 0x200, scoped, tag = 'scoped memory for gan_forward.1']
  %s0 = inlined_call_operand.vmem [shape: f32[16,32], index: 0, kind: input, shape index: {}]
  %s1 = inlined_call_operand.vmem [shape: bf16[32,128], index: 1, kind: input, shape index: {}]
  %s2 = inlined_call_operand.vmem [shape: f32[1,128], index: 2, kind: input, shape index: {}]
  %s3 = inlined_call_operand.vmem [shape: bf16[128,256], index: 3, kind: input, shape index: {}]
  %s4 = inlined_call_operand.vmem [shape: f32[1,256], index: 4, kind: input, shape index: {}]
  %s5 = inlined_call_operand.hbm [shape: bf16[256,512], index: 5, kind: input, shape index: {}]
  %s6 = inlined_call_operand.vmem [shape: f32[1,512], index: 6, kind: input, shape index: {}]
  %s7 = inlined_call_operand.vmem [shape: bf16[512,64], index: 7, kind: input, shape index: {}]
  %s8 = inlined_call_operand.vmem [shape: f32[1,64], index: 8, kind: input, shape index: {}]
  %s9 = inlined_call_operand.vmem [shape: bf16[64,512], index: 9, kind: input, shape index: {}]
  %s10 = inlined_call_operand.vmem [shape: f32[1,512], index: 10, kind: input, shape index: {}]
  %s11 = inlined_call_operand.hbm [shape: bf16[512,256], index: 11, kind: input, shape index: {}]
  %s12 = inlined_call_operand.vmem [shape: f32[1,256], index: 12, kind: input, shape index: {}]
  %s13 = inlined_call_operand.vmem [shape: bf16[256,128], index: 13, kind: input, shape index: {}]
  %s14 = inlined_call_operand.vmem [shape: f32[1,128], index: 14, kind: input, shape index: {}]
  %s15 = inlined_call_operand.vmem [shape: bf16[1,128], index: 15, kind: input, shape index: {}]
  %s16 = inlined_call_operand.<no memory space> [shape: f32[1,1], index: 16, kind: input, shape index: {}]
  %s17 = inlined_call_operand.vmem [shape: f32[1,16], index: 17, kind: output, shape index: {}]
  %s18 = sld [smem:[#allocation0]]
  $region86: #{gan_forward.1} parent=0
    _
  %s20 = ssub.s32 1, %s18
  %s21 = scalar_select 0, %s20, %s18
  %v22 = vstv %s16
  %23 = vst [vmem:[#allocation2] sm:$0x1] %v22
  $region1: #{gan_forward.1} parent=0
    #allocation3 [shape = 'u8[262144]{0}', space=vmem, size = 0x40000, scoped, tag = 'input window, operand 5, single buffered']
    #allocation4 [shape = 's32[1]{0}', space=sflag, size = 0x4, scoped, tag = 'scoped memory for gan_forward.1']
    #allocation5 [shape = 'u8[262144]{0}', space=vmem, size = 0x40000, scoped, tag = 'input window, operand 11, single buffered']
    #allocation6 [shape = 's32[1]{0}', space=sflag, size = 0x4, scoped, tag = 'scoped memory for gan_forward.1']
    %24 = vsyncpa [#allocation4], 0
    %25 = vsyncpa [#allocation6], 0
    // Predicated region
    $region2: #{gan_forward.1} parent=1 // pred_check
      _
    $region3: #{gan_forward.1} parent=1 // pred_check_branch
      %27 = sbr.rel (0) target = $region5
    $region4: #{gan_forward.1} parent=1 // pred_region
      _
    $region5: #{gan_forward.1} parent=1 // pred_fallthru
      _
    // Predicated region
    $region6: #{gan_forward.1} parent=1 // pred_check
      _
    $region7: #{gan_forward.1} parent=1 // pred_check_branch
      %29 = sbr.rel (0) target = $region9
    $region8: #{gan_forward.1} parent=1 // pred_region
      _
    $region9: #{gan_forward.1} parent=1 // pred_fallthru
      _
    // Predicated region
    $region10: #{gan_forward.1} parent=1 // pred_check
      _
    $region11: #{gan_forward.1} parent=1 // pred_check_branch
      %31 = sbr.rel (0) target = $region13
    $region12: #{gan_forward.1} parent=1 // pred_region
      _
    $region13: #{gan_forward.1} parent=1 // pred_fallthru
      _
    // Predicated region
    $region14: #{gan_forward.1} parent=1 // pred_check
      _
    $region15: #{gan_forward.1} parent=1 // pred_check_branch
      %33 = sbr.rel (0) target = $region17
    $region16: #{gan_forward.1} parent=1 // pred_region
      _
    $region17: #{gan_forward.1} parent=1 // pred_fallthru
      _
    // Predicated region
    $region18: #{gan_forward.1} parent=1 // pred_check
      _
    $region19: #{gan_forward.1} parent=1 // pred_check_branch
      %35 = sbr.rel (0) target = $region21
    $region20: #{gan_forward.1} parent=1 // pred_region
      _
    $region21: #{gan_forward.1} parent=1 // pred_fallthru
      _
    // Predicated region
    $region22: #{gan_forward.1} parent=1 // pred_check
      _
    $region23: #{gan_forward.1} parent=1 // pred_check_branch
      %37 = sbr.rel (0) target = $region25
    $region24: #{gan_forward.1} parent=1 // pred_region
      %s39 = ssub.s32 8192, 8192
      %40 = vsyncadd [#allocation4], %s39
      %s41 = sshll.u32 [#allocation3], 4
      %s42 = int_to_ptr.vmem [resolvable:$true] %s41
      %47 = dma.hbm_to_vmem [thread:$0]  %s5, 8192, %s42, [#allocation4], 256, 256, 16
    $region25: #{gan_forward.1} parent=1 // pred_fallthru
      _
    // Predicated region
    $region26: #{gan_forward.1} parent=1 // pred_check
      _
    $region27: #{gan_forward.1} parent=1 // pred_check_branch
      %49 = sbr.rel (0) target = $region29
    $region28: #{gan_forward.1} parent=1 // pred_region
      _
    $region29: #{gan_forward.1} parent=1 // pred_fallthru
      _
    // Predicated region
    $region30: #{gan_forward.1} parent=1 // pred_check
      _
    $region31: #{gan_forward.1} parent=1 // pred_check_branch
      %51 = sbr.rel (0) target = $region33
    $region32: #{gan_forward.1} parent=1 // pred_region
      _
    $region33: #{gan_forward.1} parent=1 // pred_fallthru
      _
    // Predicated region
    $region34: #{gan_forward.1} parent=1 // pred_check
      _
    $region35: #{gan_forward.1} parent=1 // pred_check_branch
      %53 = sbr.rel (0) target = $region37
    $region36: #{gan_forward.1} parent=1 // pred_region
      _
    $region37: #{gan_forward.1} parent=1 // pred_fallthru
      _
    // Predicated region
    $region38: #{gan_forward.1} parent=1 // pred_check
      _
    $region39: #{gan_forward.1} parent=1 // pred_check_branch
      %55 = sbr.rel (0) target = $region41
    $region40: #{gan_forward.1} parent=1 // pred_region
      _
    $region41: #{gan_forward.1} parent=1 // pred_fallthru
      _
    // Predicated region
    $region42: #{gan_forward.1} parent=1 // pred_check
      _
    $region43: #{gan_forward.1} parent=1 // pred_check_branch
      %57 = sbr.rel (0) target = $region45
    $region44: #{gan_forward.1} parent=1 // pred_region
      _
    $region45: #{gan_forward.1} parent=1 // pred_fallthru
      _
    // Predicated region
    $region46: #{gan_forward.1} parent=1 // pred_check
      _
    $region47: #{gan_forward.1} parent=1 // pred_check_branch
      %59 = sbr.rel (0) target = $region49
    $region48: #{gan_forward.1} parent=1 // pred_region
      %s61 = ssub.s32 8192, 8192
      %62 = vsyncadd [#allocation6], %s61
      %s63 = sshll.u32 [#allocation5], 4
      %s64 = int_to_ptr.vmem [resolvable:$true] %s63
      %69 = dma.hbm_to_vmem [thread:$0]  %s11, 8192, %s64, [#allocation6], 128, 128, 8
    $region49: #{gan_forward.1} parent=1 // pred_fallthru
      _
    // Predicated region
    $region50: #{gan_forward.1} parent=1 // pred_check
      _
    $region51: #{gan_forward.1} parent=1 // pred_check_branch
      %71 = sbr.rel (0) target = $region53
    $region52: #{gan_forward.1} parent=1 // pred_region
      _
    $region53: #{gan_forward.1} parent=1 // pred_fallthru
      _
    // Predicated region
    $region54: #{gan_forward.1} parent=1 // pred_check
      _
    $region55: #{gan_forward.1} parent=1 // pred_check_branch
      %73 = sbr.rel (0) target = $region57
    $region56: #{gan_forward.1} parent=1 // pred_region
      _
    $region57: #{gan_forward.1} parent=1 // pred_fallthru
      _
    // Predicated region
    $region58: #{gan_forward.1} parent=1 // pred_check
      _
    $region59: #{gan_forward.1} parent=1 // pred_check_branch
      %75 = sbr.rel (0) target = $region61
    $region60: #{gan_forward.1} parent=1 // pred_region
      _
    $region61: #{gan_forward.1} parent=1 // pred_fallthru
      _
    // Predicated region
    $region62: #{gan_forward.1} parent=1 // pred_check
      _
    $region63: #{gan_forward.1} parent=1 // pred_check_branch
      %77 = sbr.rel (0) target = $region65
    $region64: #{gan_forward.1} parent=1 // pred_region
      _
    $region65: #{gan_forward.1} parent=1 // pred_fallthru
      _
    // Predicated region
    $region66: #{gan_forward.1} parent=1 // pred_check
      _
    $region67: #{gan_forward.1} parent=1 // pred_check_branch
      %79 = sbr.rel (0) target = $region69
    $region68: #{gan_forward.1} parent=1 // pred_region
      _
    $region69: #{gan_forward.1} parent=1 // pred_fallthru
      _
    // Predicated region
    $region70: #{gan_forward.1} parent=1 // pred_check
      _
    $region71: #{gan_forward.1} parent=1 // pred_check_branch
      %81 = sbr.rel (0) target = $region73
    $region72: #{gan_forward.1} parent=1 // pred_region
      %82 = dma.done [#allocation4], 8192
    $region73: #{gan_forward.1} parent=1 // pred_fallthru
      _
    // Predicated region
    $region74: #{gan_forward.1} parent=1 // pred_check
      _
    $region75: #{gan_forward.1} parent=1 // pred_check_branch
      %84 = sbr.rel (0) target = $region77
    $region76: #{gan_forward.1} parent=1 // pred_region
      %85 = dma.done [#allocation6], 8192
    $region77: #{gan_forward.1} parent=1 // pred_fallthru
      _
    %v87 = vld [vmem:[%s0] sm:$0xff]
    %v88 = vld [vmem:[%s0 + $0x8] sm:$0xff]
    %v89 = vpack.c.bf16 %v88, %v87
    %v90 = vld [vmem:[%s1] sm:$0xf]
    %v91 = vld [vmem:[%s1 + $0x4] sm:$0xf]
    %v92 = vld [vmem:[%s1 + $0x8] sm:$0xf]
    %v93 = vld [vmem:[%s1 + $0xc] sm:$0xf]
    %v94 = vld [vmem:[%s2] sm:$0x1]
    %v96 = vlaneseq
    %v97 = vshrl.u32 %v96, 7
    %v98 = vsub.s32 0, %v97
    %v99 = vrot.slane %v94, %v98
    %v105 = vunpack.c.l.b16 %v90
    %v106 = vunpack.c.l.b16 %v91
    %v107 = vunpack.c.l.b16 %v92
    %v108 = vunpack.c.l.b16 %v93
    %v109 = vpack.c.b16 %v106, %v105
    %v110 = vpack.c.b16 %v108, %v107
    %vm113 = vcmask 261120
    %v115 = vsel %vm113, %v89, 0
    %117 = vmatprep.subr.bf16.mxu0 0
    %118 = vmatpush1.bf16.msra.mxu0 %v109
    %119 = vmatprep.subr.bf16.mxu0 0
    %120 = vmatpush1.bf16.msra.mxu0 %v110
    %121 = vmatprep.subr.bf16.mxu0 0
    %122 = vmatpush1.bf16.msra.mxu0 0
    %123 = vmatprep.subr.bf16.mxu0 0
    %124 = vmatpush1.bf16.msra.mxu0 0
    %125 = vmatprep.subr.bf16.mxu0 0
    %126 = vmatpush1.bf16.msra.mxu0 0
    %127 = vmatprep.subr.bf16.mxu0 0
    %128 = vmatpush1.bf16.msra.mxu0 0
    %129 = vmatprep.subr.bf16.mxu0 0
    %130 = vmatpush1.bf16.msra.mxu0 0
    %131 = vmatprep.subr.bf16.mxu0 0
    %132 = vmatpush1.bf16.msra.mxu0 0
    %133 = vmatprep.subr.bf16.mxu0 0
    %134 = vmatpush1.bf16.msra.mxu0 0
    %135 = vmatprep.subr.bf16.mxu0 0
    %136 = vmatpush1.bf16.msra.mxu0 0
    %137 = vmatprep.subr.bf16.mxu0 0
    %138 = vmatpush1.bf16.msra.mxu0 0
    %139 = vmatprep.subr.bf16.mxu0 0
    %140 = vmatpush1.bf16.msra.mxu0 0
    %141 = vmatprep.subr.bf16.mxu0 0
    %142 = vmatpush1.bf16.msra.mxu0 0
    %143 = vmatprep.subr.bf16.mxu0 0
    %144 = vmatpush1.bf16.msra.mxu0 0
    %145 = vmatprep.subr.bf16.mxu0 0
    %146 = vmatpush1.bf16.msra.mxu0 0
    %147 = vmatprep.subr.bf16.mxu0 0
    %148 = vmatpush1.bf16.msra.mxu0 0
    %149 = vmatprep.mubr.bf16.mxu0 0
    %150 = vmatmul.mubr.bf16.gmra.mrb[0].mxu0 %v115
    %v151 = vpop.f32.mrb[0].mxu0
    %v152 = vadd.f32 %v99, %v151
    %v153 = vpop.f32.mrb[0].mxu0
    %v154 = vpop.f32.mrb[0].mxu0
    %v155 = vadd.f32 %v99, %v154
    %v156 = vpop.f32.mrb[0].mxu0
    %157 = vdwg.mxu0
    %v158 = vmax.f32 %v152, 0.0
    %v159 = vmax.f32 %v155, 0.0
    %v160 = vpack.c.bf16 %v159, %v158
    %v161 = vld [vmem:[%s3] sm:$0xff]
    %v162 = vld [vmem:[%s3 + $0x8] sm:$0xff]
    %v163 = vld [vmem:[%s3 + $0x10] sm:$0xff]
    %v164 = vld [vmem:[%s3 + $0x18] sm:$0xff]
    %v165 = vld [vmem:[%s3 + $0x20] sm:$0xff]
    %v166 = vld [vmem:[%s3 + $0x28] sm:$0xff]
    %v167 = vld [vmem:[%s3 + $0x30] sm:$0xff]
    %v168 = vld [vmem:[%s3 + $0x38] sm:$0xff]
    %v169 = vld [vmem:[%s3 + $0x40] sm:$0xff]
    %v170 = vld [vmem:[%s3 + $0x48] sm:$0xff]
    %v171 = vld [vmem:[%s3 + $0x50] sm:$0xff]
    %v172 = vld [vmem:[%s3 + $0x58] sm:$0xff]
    %v173 = vld [vmem:[%s3 + $0x60] sm:$0xff]
    %v174 = vld [vmem:[%s3 + $0x68] sm:$0xff]
    %v175 = vld [vmem:[%s3 + $0x70] sm:$0xff]
    %v176 = vld [vmem:[%s3 + $0x78] sm:$0xff]
    %v177 = vld [vmem:[%s4] sm:$0x3]
    %v179 = vlaneseq
    %v180 = vshrl.u32 %v179, 7
    %v181 = vsub.s32 0, %v180
    %v182 = vrot.slane %v177, %v181
    %v183 = vlaneseq
    %v184 = vshrl.u32 %v183, 7
    %v185 = vsub.s32 1, %v184
    %v186 = vrot.slane %v177, %v185
    %v205 = vunpack.c.l.b16 %v161
    %v206 = vunpack.c.h.b16 %v161
    %v207 = vunpack.c.l.b16 %v162
    %v208 = vunpack.c.h.b16 %v162
    %v209 = vunpack.c.l.b16 %v163
    %v210 = vunpack.c.h.b16 %v163
    %v211 = vunpack.c.l.b16 %v164
    %v212 = vunpack.c.h.b16 %v164
    %v213 = vunpack.c.l.b16 %v165
    %v214 = vunpack.c.h.b16 %v165
    %v215 = vunpack.c.l.b16 %v166
    %v216 = vunpack.c.h.b16 %v166
    %v217 = vunpack.c.l.b16 %v167
    %v218 = vunpack.c.h.b16 %v167
    %v219 = vunpack.c.l.b16 %v168
    %v220 = vunpack.c.h.b16 %v168
    %v221 = vunpack.c.l.b16 %v169
    %v222 = vunpack.c.h.b16 %v169
    %v223 = vunpack.c.l.b16 %v170
    %v224 = vunpack.c.h.b16 %v170
    %v225 = vunpack.c.l.b16 %v171
    %v226 = vunpack.c.h.b16 %v171
    %v227 = vunpack.c.l.b16 %v172
    %v228 = vunpack.c.h.b16 %v172
    %v229 = vunpack.c.l.b16 %v173
    %v230 = vunpack.c.h.b16 %v173
    %v231 = vunpack.c.l.b16 %v174
    %v232 = vunpack.c.h.b16 %v174
    %v233 = vunpack.c.l.b16 %v175
    %v234 = vunpack.c.h.b16 %v175
    %v235 = vunpack.c.l.b16 %v176
    %v236 = vunpack.c.h.b16 %v176
    %v237 = vpack.c.b16 %v207, %v205
    %v238 = vpack.c.b16 %v208, %v206
    %v239 = vpack.c.b16 %v211, %v209
    %v240 = vpack.c.b16 %v212, %v210
    %v241 = vpack.c.b16 %v215, %v213
    %v242 = vpack.c.b16 %v216, %v214
    %v243 = vpack.c.b16 %v219, %v217
    %v244 = vpack.c.b16 %v220, %v218
    %v245 = vpack.c.b16 %v223, %v221
    %v246 = vpack.c.b16 %v224, %v222
    %v247 = vpack.c.b16 %v227, %v225
    %v248 = vpack.c.b16 %v228, %v226
    %v249 = vpack.c.b16 %v231, %v229
    %v250 = vpack.c.b16 %v232, %v230
    %v251 = vpack.c.b16 %v235, %v233
    %v252 = vpack.c.b16 %v236, %v234
    %269 = vmatprep.subr.bf16.mxu0 %v238
    %270 = vmatpush1.bf16.msra.mxu0 %v237
    %271 = vmatprep.subr.bf16.mxu0 %v240
    %272 = vmatpush1.bf16.msra.mxu0 %v239
    %273 = vmatprep.subr.bf16.mxu0 %v242
    %274 = vmatpush1.bf16.msra.mxu0 %v241
    %275 = vmatprep.subr.bf16.mxu0 %v244
    %276 = vmatpush1.bf16.msra.mxu0 %v243
    %277 = vmatprep.subr.bf16.mxu0 %v246
    %278 = vmatpush1.bf16.msra.mxu0 %v245
    %279 = vmatprep.subr.bf16.mxu0 %v248
    %280 = vmatpush1.bf16.msra.mxu0 %v247
    %281 = vmatprep.subr.bf16.mxu0 %v250
    %282 = vmatpush1.bf16.msra.mxu0 %v249
    %283 = vmatprep.subr.bf16.mxu0 %v252
    %284 = vmatpush1.bf16.msra.mxu0 %v251
    %285 = vmatprep.subr.bf16.mxu0 0
    %286 = vmatpush1.bf16.msra.mxu0 0
    %287 = vmatprep.subr.bf16.mxu0 0
    %288 = vmatpush1.bf16.msra.mxu0 0
    %289 = vmatprep.subr.bf16.mxu0 0
    %290 = vmatpush1.bf16.msra.mxu0 0
    %291 = vmatprep.subr.bf16.mxu0 0
    %292 = vmatpush1.bf16.msra.mxu0 0
    %293 = vmatprep.subr.bf16.mxu0 0
    %294 = vmatpush1.bf16.msra.mxu0 0
    %295 = vmatprep.subr.bf16.mxu0 0
    %296 = vmatpush1.bf16.msra.mxu0 0
    %297 = vmatprep.subr.bf16.mxu0 0
    %298 = vmatpush1.bf16.msra.mxu0 0
    %299 = vmatprep.subr.bf16.mxu0 0
    %300 = vmatpush1.bf16.msra.mxu0 0
    %301 = vmatprep.mubr.bf16.mxu0 0
    %302 = vmatmul.mubr.bf16.gmra.mrb[0].mxu0 %v160
    %v303 = vpop.f32.mrb[0].mxu0
    %v304 = vadd.f32 %v182, %v303
    %v305 = vpop.f32.mrb[0].mxu0
    %v306 = vadd.f32 %v186, %v305
    %v307 = vpop.f32.mrb[0].mxu0
    %v308 = vadd.f32 %v182, %v307
    %v309 = vpop.f32.mrb[0].mxu0
    %v310 = vadd.f32 %v186, %v309
    %311 = vdwg.mxu0
    %v312 = vmax.f32 %v304, 0.0
    %v313 = vmax.f32 %v306, 0.0
    %v314 = vmax.f32 %v308, 0.0
    %v315 = vmax.f32 %v310, 0.0
    %v316 = vpack.c.bf16 %v314, %v312
    %v317 = vpack.c.bf16 %v315, %v313
    %v318 = vld [vmem:[#allocation3] sm:$0xff]
    %v319 = vld [vmem:[#allocation3 + $0x8] sm:$0xff]
    %v320 = vld [vmem:[#allocation3 + $0x10] sm:$0xff]
    %v321 = vld [vmem:[#allocation3 + $0x18] sm:$0xff]
    %v322 = vld [vmem:[#allocation3 + $0x20] sm:$0xff]
    %v323 = vld [vmem:[#allocation3 + $0x28] sm:$0xff]
    %v324 = vld [vmem:[#allocation3 + $0x30] sm:$0xff]
    %v325 = vld [vmem:[#allocation3 + $0x38] sm:$0xff]
    %v326 = vld [vmem:[#allocation3 + $0x40] sm:$0xff]
    %v327 = vld [vmem:[#allocation3 + $0x48] sm:$0xff]
    %v328 = vld [vmem:[#allocation3 + $0x50] sm:$0xff]
    %v329 = vld [vmem:[#allocation3 + $0x58] sm:$0xff]
    %v330 = vld [vmem:[#allocation3 + $0x60] sm:$0xff]
    %v331 = vld [vmem:[#allocation3 + $0x68] sm:$0xff]
    %v332 = vld [vmem:[#allocation3 + $0x70] sm:$0xff]
    %v333 = vld [vmem:[#allocation3 + $0x78] sm:$0xff]
    %v334 = vld [vmem:[#allocation3 + $0x80] sm:$0xff]
    %v335 = vld [vmem:[#allocation3 + $0x88] sm:$0xff]
    %v336 = vld [vmem:[#allocation3 + $0x90] sm:$0xff]
    %v337 = vld [vmem:[#allocation3 + $0x98] sm:$0xff]
    %v338 = vld [vmem:[#allocation3 + $0xa0] sm:$0xff]
    %v339 = vld [vmem:[#allocation3 + $0xa8] sm:$0xff]
    %v340 = vld [vmem:[#allocation3 + $0xb0] sm:$0xff]
    %v341 = vld [vmem:[#allocation3 + $0xb8] sm:$0xff]
    %v342 = vld [vmem:[#allocation3 + $0xc0] sm:$0xff]
    %v343 = vld [vmem:[#allocation3 + $0xc8] sm:$0xff]
    %v344 = vld [vmem:[#allocation3 + $0xd0] sm:$0xff]
    %v345 = vld [vmem:[#allocation3 + $0xd8] sm:$0xff]
    %v346 = vld [vmem:[#allocation3 + $0xe0] sm:$0xff]
    %v347 = vld [vmem:[#allocation3 + $0xe8] sm:$0xff]
    %v348 = vld [vmem:[#allocation3 + $0xf0] sm:$0xff]
    %v349 = vld [vmem:[#allocation3 + $0xf8] sm:$0xff]
    %v350 = vld [vmem:[#allocation3 + $0x100] sm:$0xff]
    %v351 = vld [vmem:[#allocation3 + $0x108] sm:$0xff]
    %v352 = vld [vmem:[#allocation3 + $0x110] sm:$0xff]
    %v353 = vld [vmem:[#allocation3 + $0x118] sm:$0xff]
    %v354 = vld [vmem:[#allocation3 + $0x120] sm:$0xff]
    %v355 = vld [vmem:[#allocation3 + $0x128] sm:$0xff]
    %v356 = vld [vmem:[#allocation3 + $0x130] sm:$0xff]
    %v357 = vld [vmem:[#allocation3 + $0x138] sm:$0xff]
    %v358 = vld [vmem:[#allocation3 + $0x140] sm:$0xff]
    %v359 = vld [vmem:[#allocation3 + $0x148] sm:$0xff]
    %v360 = vld [vmem:[#allocation3 + $0x150] sm:$0xff]
    %v361 = vld [vmem:[#allocation3 + $0x158] sm:$0xff]
    %v362 = vld [vmem:[#allocation3 + $0x160] sm:$0xff]
    %v363 = vld [vmem:[#allocation3 + $0x168] sm:$0xff]
    %v364 = vld [vmem:[#allocation3 + $0x170] sm:$0xff]
    %v365 = vld [vmem:[#allocation3 + $0x178] sm:$0xff]
    %v366 = vld [vmem:[#allocation3 + $0x180] sm:$0xff]
    %v367 = vld [vmem:[#allocation3 + $0x188] sm:$0xff]
    %v368 = vld [vmem:[#allocation3 + $0x190] sm:$0xff]
    %v369 = vld [vmem:[#allocation3 + $0x198] sm:$0xff]
    %v370 = vld [vmem:[#allocation3 + $0x1a0] sm:$0xff]
    %v371 = vld [vmem:[#allocation3 + $0x1a8] sm:$0xff]
    %v372 = vld [vmem:[#allocation3 + $0x1b0] sm:$0xff]
    %v373 = vld [vmem:[#allocation3 + $0x1b8] sm:$0xff]
    %v374 = vld [vmem:[#allocation3 + $0x1c0] sm:$0xff]
    %v375 = vld [vmem:[#allocation3 + $0x1c8] sm:$0xff]
    %v376 = vld [vmem:[#allocation3 + $0x1d0] sm:$0xff]
    %v377 = vld [vmem:[#allocation3 + $0x1d8] sm:$0xff]
    %v378 = vld [vmem:[#allocation3 + $0x1e0] sm:$0xff]
    %v379 = vld [vmem:[#allocation3 + $0x1e8] sm:$0xff]
    %v380 = vld [vmem:[#allocation3 + $0x1f0] sm:$0xff]
    %v381 = vld [vmem:[#allocation3 + $0x1f8] sm:$0xff]
    %v382 = vld [vmem:[%s6] sm:$0xf]
    %v384 = vlaneseq
    %v385 = vshrl.u32 %v384, 7
    %v386 = vsub.s32 0, %v385
    %v387 = vrot.slane %v382, %v386
    %v388 = vlaneseq
    %v389 = vshrl.u32 %v388, 7
    %v390 = vsub.s32 1, %v389
    %v391 = vrot.slane %v382, %v390
    %v392 = vlaneseq
    %v393 = vshrl.u32 %v392, 7
    %v394 = vsub.s32 2, %v393
    %v395 = vrot.slane %v382, %v394
    %v396 = vlaneseq
    %v397 = vshrl.u32 %v396, 7
    %v398 = vsub.s32 3, %v397
    %v399 = vrot.slane %v382, %v398
    %v468 = vunpack.c.l.b16 %v318
    %v469 = vunpack.c.h.b16 %v318
    %v470 = vunpack.c.l.b16 %v319
    %v471 = vunpack.c.h.b16 %v319
    %v472 = vunpack.c.l.b16 %v320
    %v473 = vunpack.c.h.b16 %v320
    %v474 = vunpack.c.l.b16 %v321
    %v475 = vunpack.c.h.b16 %v321
    %v476 = vunpack.c.l.b16 %v322
    %v477 = vunpack.c.h.b16 %v322
    %v478 = vunpack.c.l.b16 %v323
    %v479 = vunpack.c.h.b16 %v323
    %v480 = vunpack.c.l.b16 %v324
    %v481 = vunpack.c.h.b16 %v324
    %v482 = vunpack.c.l.b16 %v325
    %v483 = vunpack.c.h.b16 %v325
    %v484 = vunpack.c.l.b16 %v326
    %v485 = vunpack.c.h.b16 %v326
    %v486 = vunpack.c.l.b16 %v327
    %v487 = vunpack.c.h.b16 %v327
    %v488 = vunpack.c.l.b16 %v328
    %v489 = vunpack.c.h.b16 %v328
    %v490 = vunpack.c.l.b16 %v329
    %v491 = vunpack.c.h.b16 %v329
    %v492 = vunpack.c.l.b16 %v330
    %v493 = vunpack.c.h.b16 %v330
    %v494 = vunpack.c.l.b16 %v331
    %v495 = vunpack.c.h.b16 %v331
    %v496 = vunpack.c.l.b16 %v332
    %v497 = vunpack.c.h.b16 %v332
    %v498 = vunpack.c.l.b16 %v333
    %v499 = vunpack.c.h.b16 %v333
    %v500 = vunpack.c.l.b16 %v334
    %v501 = vunpack.c.h.b16 %v334
    %v502 = vunpack.c.l.b16 %v335
    %v503 = vunpack.c.h.b16 %v335
    %v504 = vunpack.c.l.b16 %v336
    %v505 = vunpack.c.h.b16 %v336
    %v506 = vunpack.c.l.b16 %v337
    %v507 = vunpack.c.h.b16 %v337
    %v508 = vunpack.c.l.b16 %v338
    %v509 = vunpack.c.h.b16 %v338
    %v510 = vunpack.c.l.b16 %v339
    %v511 = vunpack.c.h.b16 %v339
    %v512 = vunpack.c.l.b16 %v340
    %v513 = vunpack.c.h.b16 %v340
    %v514 = vunpack.c.l.b16 %v341
    %v515 = vunpack.c.h.b16 %v341
    %v516 = vunpack.c.l.b16 %v342
    %v517 = vunpack.c.h.b16 %v342
    %v518 = vunpack.c.l.b16 %v343
    %v519 = vunpack.c.h.b16 %v343
    %v520 = vunpack.c.l.b16 %v344
    %v521 = vunpack.c.h.b16 %v344
    %v522 = vunpack.c.l.b16 %v345
    %v523 = vunpack.c.h.b16 %v345
    %v524 = vunpack.c.l.b16 %v346
    %v525 = vunpack.c.h.b16 %v346
    %v526 = vunpack.c.l.b16 %v347
    %v527 = vunpack.c.h.b16 %v347
    %v528 = vunpack.c.l.b16 %v348
    %v529 = vunpack.c.h.b16 %v348
    %v530 = vunpack.c.l.b16 %v349
    %v531 = vunpack.c.h.b16 %v349
    %v532 = vunpack.c.l.b16 %v350
    %v533 = vunpack.c.h.b16 %v350
    %v534 = vunpack.c.l.b16 %v351
    %v535 = vunpack.c.h.b16 %v351
    %v536 = vunpack.c.l.b16 %v352
    %v537 = vunpack.c.h.b16 %v352
    %v538 = vunpack.c.l.b16 %v353
    %v539 = vunpack.c.h.b16 %v353
    %v540 = vunpack.c.l.b16 %v354
    %v541 = vunpack.c.h.b16 %v354
    %v542 = vunpack.c.l.b16 %v355
    %v543 = vunpack.c.h.b16 %v355
    %v544 = vunpack.c.l.b16 %v356
    %v545 = vunpack.c.h.b16 %v356
    %v546 = vunpack.c.l.b16 %v357
    %v547 = vunpack.c.h.b16 %v357
    %v548 = vunpack.c.l.b16 %v358
    %v549 = vunpack.c.h.b16 %v358
    %v550 = vunpack.c.l.b16 %v359
    %v551 = vunpack.c.h.b16 %v359
    %v552 = vunpack.c.l.b16 %v360
    %v553 = vunpack.c.h.b16 %v360
    %v554 = vunpack.c.l.b16 %v361
    %v555 = vunpack.c.h.b16 %v361
    %v556 = vunpack.c.l.b16 %v362
    %v557 = vunpack.c.h.b16 %v362
    %v558 = vunpack.c.l.b16 %v363
    %v559 = vunpack.c.h.b16 %v363
    %v560 = vunpack.c.l.b16 %v364
    %v561 = vunpack.c.h.b16 %v364
    %v562 = vunpack.c.l.b16 %v365
    %v563 = vunpack.c.h.b16 %v365
    %v564 = vunpack.c.l.b16 %v366
    %v565 = vunpack.c.h.b16 %v366
    %v566 = vunpack.c.l.b16 %v367
    %v567 = vunpack.c.h.b16 %v367
    %v568 = vunpack.c.l.b16 %v368
    %v569 = vunpack.c.h.b16 %v368
    %v570 = vunpack.c.l.b16 %v369
    %v571 = vunpack.c.h.b16 %v369
    %v572 = vunpack.c.l.b16 %v370
    %v573 = vunpack.c.h.b16 %v370
    %v574 = vunpack.c.l.b16 %v371
    %v575 = vunpack.c.h.b16 %v371
    %v576 = vunpack.c.l.b16 %v372
    %v577 = vunpack.c.h.b16 %v372
    %v578 = vunpack.c.l.b16 %v373
    %v579 = vunpack.c.h.b16 %v373
    %v580 = vunpack.c.l.b16 %v374
    %v581 = vunpack.c.h.b16 %v374
    %v582 = vunpack.c.l.b16 %v375
    %v583 = vunpack.c.h.b16 %v375
    %v584 = vunpack.c.l.b16 %v376
    %v585 = vunpack.c.h.b16 %v376
    %v586 = vunpack.c.l.b16 %v377
    %v587 = vunpack.c.h.b16 %v377
    %v588 = vunpack.c.l.b16 %v378
    %v589 = vunpack.c.h.b16 %v378
    %v590 = vunpack.c.l.b16 %v379
    %v591 = vunpack.c.h.b16 %v379
    %v592 = vunpack.c.l.b16 %v380
    %v593 = vunpack.c.h.b16 %v380
    %v594 = vunpack.c.l.b16 %v381
    %v595 = vunpack.c.h.b16 %v381
    %v596 = vpack.c.b16 %v472, %v468
    %v597 = vpack.c.b16 %v473, %v469
    %v598 = vpack.c.b16 %v474, %v470
    %v599 = vpack.c.b16 %v475, %v471
    %v600 = vpack.c.b16 %v480, %v476
    %v601 = vpack.c.b16 %v481, %v477
    %v602 = vpack.c.b16 %v482, %v478
    %v603 = vpack.c.b16 %v483, %v479
    %v604 = vpack.c.b16 %v488, %v484
    %v605 = vpack.c.b16 %v489, %v485
    %v606 = vpack.c.b16 %v490, %v486
    %v607 = vpack.c.b16 %v491, %v487
    %v608 = vpack.c.b16 %v496, %v492
    %v609 = vpack.c.b16 %v497, %v493
    %v610 = vpack.c.b16 %v498, %v494
    %v611 = vpack.c.b16 %v499, %v495
    %v612 = vpack.c.b16 %v504, %v500
    %v613 = vpack.c.b16 %v505, %v501
    %v614 = vpack.c.b16 %v506, %v502
    %v615 = vpack.c.b16 %v507, %v503
    %v616 = vpack.c.b16 %v512, %v508
    %v617 = vpack.c.b16 %v513, %v509
    %v618 = vpack.c.b16 %v514, %v510
    %v619 = vpack.c.b16 %v515, %v511
    %v620 = vpack.c.b16 %v520, %v516
    %v621 = vpack.c.b16 %v521, %v517
    %v622 = vpack.c.b16 %v522, %v518
    %v623 = vpack.c.b16 %v523, %v519
    %v624 = vpack.c.b16 %v528, %v524
    %v625 = vpack.c.b16 %v529, %v525
    %v626 = vpack.c.b16 %v530, %v526
    %v627 = vpack.c.b16 %v531, %v527
    %v628 = vpack.c.b16 %v536, %v532
    %v629 = vpack.c.b16 %v537, %v533
    %v630 = vpack.c.b16 %v538, %v534
    %v631 = vpack.c.b16 %v539, %v535
    %v632 = vpack.c.b16 %v544, %v540
    %v633 = vpack.c.b16 %v545, %v541
    %v634 = vpack.c.b16 %v546, %v542
    %v635 = vpack.c.b16 %v547, %v543
    %v636 = vpack.c.b16 %v552, %v548
    %v637 = vpack.c.b16 %v553, %v549
    %v638 = vpack.c.b16 %v554, %v550
    %v639 = vpack.c.b16 %v555, %v551
    %v640 = vpack.c.b16 %v560, %v556
    %v641 = vpack.c.b16 %v561, %v557
    %v642 = vpack.c.b16 %v562, %v558
    %v643 = vpack.c.b16 %v563, %v559
    %v644 = vpack.c.b16 %v568, %v564
    %v645 = vpack.c.b16 %v569, %v565
    %v646 = vpack.c.b16 %v570, %v566
    %v647 = vpack.c.b16 %v571, %v567
    %v648 = vpack.c.b16 %v576, %v572
    %v649 = vpack.c.b16 %v577, %v573
    %v650 = vpack.c.b16 %v578, %v574
    %v651 = vpack.c.b16 %v579, %v575
    %v652 = vpack.c.b16 %v584, %v580
    %v653 = vpack.c.b16 %v585, %v581
    %v654 = vpack.c.b16 %v586, %v582
    %v655 = vpack.c.b16 %v587, %v583
    %v656 = vpack.c.b16 %v592, %v588
    %v657 = vpack.c.b16 %v593, %v589
    %v658 = vpack.c.b16 %v594, %v590
    %v659 = vpack.c.b16 %v595, %v591
    %724 = vmatprep.subr.bf16.mxu0 %v597
    %725 = vmatpush1.bf16.msra.mxu0 %v596
    %726 = vmatprep.subr.bf16.mxu0 %v601
    %727 = vmatpush1.bf16.msra.mxu0 %v600
    %728 = vmatprep.subr.bf16.mxu0 %v605
    %729 = vmatpush1.bf16.msra.mxu0 %v604
    %730 = vmatprep.subr.bf16.mxu0 %v609
    %731 = vmatpush1.bf16.msra.mxu0 %v608
    %732 = vmatprep.subr.bf16.mxu0 %v613
    %733 = vmatpush1.bf16.msra.mxu0 %v612
    %734 = vmatprep.subr.bf16.mxu0 %v617
    %735 = vmatpush1.bf16.msra.mxu0 %v616
    %736 = vmatprep.subr.bf16.mxu0 %v621
    %737 = vmatpush1.bf16.msra.mxu0 %v620
    %738 = vmatprep.subr.bf16.mxu0 %v625
    %739 = vmatpush1.bf16.msra.mxu0 %v624
    %740 = vmatprep.subr.bf16.mxu0 %v629
    %741 = vmatpush1.bf16.msra.mxu0 %v628
    %742 = vmatprep.subr.bf16.mxu0 %v633
    %743 = vmatpush1.bf16.msra.mxu0 %v632
    %744 = vmatprep.subr.bf16.mxu0 %v637
    %745 = vmatpush1.bf16.msra.mxu0 %v636
    %746 = vmatprep.subr.bf16.mxu0 %v641
    %747 = vmatpush1.bf16.msra.mxu0 %v640
    %748 = vmatprep.subr.bf16.mxu0 %v645
    %749 = vmatpush1.bf16.msra.mxu0 %v644
    %750 = vmatprep.subr.bf16.mxu0 %v649
    %751 = vmatpush1.bf16.msra.mxu0 %v648
    %752 = vmatprep.subr.bf16.mxu0 %v653
    %753 = vmatpush1.bf16.msra.mxu0 %v652
    %754 = vmatprep.subr.bf16.mxu0 %v657
    %755 = vmatpush1.bf16.msra.mxu0 %v656
    %756 = vmatprep.mubr.bf16.mxu0 %v317
    %757 = vmatmul.mubr.bf16.gmra.mrb[0].mxu0 %v316
    %v758 = vpop.f32.mrb[0].mxu0
    %v759 = vadd.f32 %v387, %v758
    %v760 = vpop.f32.mrb[0].mxu0
    %v761 = vadd.f32 %v391, %v760
    %v762 = vpop.f32.mrb[0].mxu0
    %v763 = vadd.f32 %v387, %v762
    %v764 = vpop.f32.mrb[0].mxu0
    %v765 = vadd.f32 %v391, %v764
    %766 = vdwg.mxu0
    %767 = vmatprep.subr.bf16.mxu0 %v599
    %768 = vmatpush1.bf16.msra.mxu0 %v598
    %769 = vmatprep.subr.bf16.mxu0 %v603
    %770 = vmatpush1.bf16.msra.mxu0 %v602
    %771 = vmatprep.subr.bf16.mxu0 %v607
    %772 = vmatpush1.bf16.msra.mxu0 %v606
    %773 = vmatprep.subr.bf16.mxu0 %v611
    %774 = vmatpush1.bf16.msra.mxu0 %v610
    %775 = vmatprep.subr.bf16.mxu0 %v615
    %776 = vmatpush1.bf16.msra.mxu0 %v614
    %777 = vmatprep.subr.bf16.mxu0 %v619
    %778 = vmatpush1.bf16.msra.mxu0 %v618
    %779 = vmatprep.subr.bf16.mxu0 %v623
    %780 = vmatpush1.bf16.msra.mxu0 %v622
    %781 = vmatprep.subr.bf16.mxu0 %v627
    %782 = vmatpush1.bf16.msra.mxu0 %v626
    %783 = vmatprep.subr.bf16.mxu0 %v631
    %784 = vmatpush1.bf16.msra.mxu0 %v630
    %785 = vmatprep.subr.bf16.mxu0 %v635
    %786 = vmatpush1.bf16.msra.mxu0 %v634
    %787 = vmatprep.subr.bf16.mxu0 %v639
    %788 = vmatpush1.bf16.msra.mxu0 %v638
    %789 = vmatprep.subr.bf16.mxu0 %v643
    %790 = vmatpush1.bf16.msra.mxu0 %v642
    %791 = vmatprep.subr.bf16.mxu0 %v647
    %792 = vmatpush1.bf16.msra.mxu0 %v646
    %793 = vmatprep.subr.bf16.mxu0 %v651
    %794 = vmatpush1.bf16.msra.mxu0 %v650
    %795 = vmatprep.subr.bf16.mxu0 %v655
    %796 = vmatpush1.bf16.msra.mxu0 %v654
    %797 = vmatprep.subr.bf16.mxu0 %v659
    %798 = vmatpush1.bf16.msra.mxu0 %v658
    %799 = vmatprep.mubr.bf16.mxu0 %v317
    %800 = vmatmul.mubr.bf16.gmra.mrb[0].mxu0 %v316
    %v801 = vpop.f32.mrb[0].mxu0
    %v802 = vadd.f32 %v395, %v801
    %v803 = vpop.f32.mrb[0].mxu0
    %v804 = vadd.f32 %v399, %v803
    %v805 = vpop.f32.mrb[0].mxu0
    %v806 = vadd.f32 %v395, %v805
    %v807 = vpop.f32.mrb[0].mxu0
    %v808 = vadd.f32 %v399, %v807
    %809 = vdwg.mxu0
    %v810 = vmax.f32 %v759, 0.0
    %v811 = vmax.f32 %v761, 0.0
    %v812 = vmax.f32 %v802, 0.0
    %v813 = vmax.f32 %v804, 0.0
    %v814 = vmax.f32 %v763, 0.0
    %v815 = vmax.f32 %v765, 0.0
    %v816 = vmax.f32 %v806, 0.0
    %v817 = vmax.f32 %v808, 0.0
    %v818 = vpack.c.bf16 %v814, %v810
    %v819 = vpack.c.bf16 %v815, %v811
    %v820 = vpack.c.bf16 %v816, %v812
    %v821 = vpack.c.bf16 %v817, %v813
    %v822 = vld [vmem:[%s7] sm:$0xf]
    %v823 = vld [vmem:[%s7 + $0x4] sm:$0xf]
    %v824 = vld [vmem:[%s7 + $0x8] sm:$0xf]
    %v825 = vld [vmem:[%s7 + $0xc] sm:$0xf]
    %v826 = vld [vmem:[%s7 + $0x10] sm:$0xf]
    %v827 = vld [vmem:[%s7 + $0x14] sm:$0xf]
    %v828 = vld [vmem:[%s7 + $0x18] sm:$0xf]
    %v829 = vld [vmem:[%s7 + $0x1c] sm:$0xf]
    %v830 = vld [vmem:[%s7 + $0x20] sm:$0xf]
    %v831 = vld [vmem:[%s7 + $0x24] sm:$0xf]
    %v832 = vld [vmem:[%s7 + $0x28] sm:$0xf]
    %v833 = vld [vmem:[%s7 + $0x2c] sm:$0xf]
    %v834 = vld [vmem:[%s7 + $0x30] sm:$0xf]
    %v835 = vld [vmem:[%s7 + $0x34] sm:$0xf]
    %v836 = vld [vmem:[%s7 + $0x38] sm:$0xf]
    %v837 = vld [vmem:[%s7 + $0x3c] sm:$0xf]
    %v838 = vld [vmem:[%s7 + $0x40] sm:$0xf]
    %v839 = vld [vmem:[%s7 + $0x44] sm:$0xf]
    %v840 = vld [vmem:[%s7 + $0x48] sm:$0xf]
    %v841 = vld [vmem:[%s7 + $0x4c] sm:$0xf]
    %v842 = vld [vmem:[%s7 + $0x50] sm:$0xf]
    %v843 = vld [vmem:[%s7 + $0x54] sm:$0xf]
    %v844 = vld [vmem:[%s7 + $0x58] sm:$0xf]
    %v845 = vld [vmem:[%s7 + $0x5c] sm:$0xf]
    %v846 = vld [vmem:[%s7 + $0x60] sm:$0xf]
    %v847 = vld [vmem:[%s7 + $0x64] sm:$0xf]
    %v848 = vld [vmem:[%s7 + $0x68] sm:$0xf]
    %v849 = vld [vmem:[%s7 + $0x6c] sm:$0xf]
    %v850 = vld [vmem:[%s7 + $0x70] sm:$0xf]
    %v851 = vld [vmem:[%s7 + $0x74] sm:$0xf]
    %v852 = vld [vmem:[%s7 + $0x78] sm:$0xf]
    %v853 = vld [vmem:[%s7 + $0x7c] sm:$0xf]
    %v854 = vld [vmem:[%s7 + $0x80] sm:$0xf]
    %v855 = vld [vmem:[%s7 + $0x84] sm:$0xf]
    %v856 = vld [vmem:[%s7 + $0x88] sm:$0xf]
    %v857 = vld [vmem:[%s7 + $0x8c] sm:$0xf]
    %v858 = vld [vmem:[%s7 + $0x90] sm:$0xf]
    %v859 = vld [vmem:[%s7 + $0x94] sm:$0xf]
    %v860 = vld [vmem:[%s7 + $0x98] sm:$0xf]
    %v861 = vld [vmem:[%s7 + $0x9c] sm:$0xf]
    %v862 = vld [vmem:[%s7 + $0xa0] sm:$0xf]
    %v863 = vld [vmem:[%s7 + $0xa4] sm:$0xf]
    %v864 = vld [vmem:[%s7 + $0xa8] sm:$0xf]
    %v865 = vld [vmem:[%s7 + $0xac] sm:$0xf]
    %v866 = vld [vmem:[%s7 + $0xb0] sm:$0xf]
    %v867 = vld [vmem:[%s7 + $0xb4] sm:$0xf]
    %v868 = vld [vmem:[%s7 + $0xb8] sm:$0xf]
    %v869 = vld [vmem:[%s7 + $0xbc] sm:$0xf]
    %v870 = vld [vmem:[%s7 + $0xc0] sm:$0xf]
    %v871 = vld [vmem:[%s7 + $0xc4] sm:$0xf]
    %v872 = vld [vmem:[%s7 + $0xc8] sm:$0xf]
    %v873 = vld [vmem:[%s7 + $0xcc] sm:$0xf]
    %v874 = vld [vmem:[%s7 + $0xd0] sm:$0xf]
    %v875 = vld [vmem:[%s7 + $0xd4] sm:$0xf]
    %v876 = vld [vmem:[%s7 + $0xd8] sm:$0xf]
    %v877 = vld [vmem:[%s7 + $0xdc] sm:$0xf]
    %v878 = vld [vmem:[%s7 + $0xe0] sm:$0xf]
    %v879 = vld [vmem:[%s7 + $0xe4] sm:$0xf]
    %v880 = vld [vmem:[%s7 + $0xe8] sm:$0xf]
    %v881 = vld [vmem:[%s7 + $0xec] sm:$0xf]
    %v882 = vld [vmem:[%s7 + $0xf0] sm:$0xf]
    %v883 = vld [vmem:[%s7 + $0xf4] sm:$0xf]
    %v884 = vld [vmem:[%s7 + $0xf8] sm:$0xf]
    %v885 = vld [vmem:[%s7 + $0xfc] sm:$0xf]
    %v886 = vld [vmem:[%s8] sm:$0x1]
    %v888 = vlaneseq
    %v889 = vshrl.u32 %v888, 7
    %v890 = vsub.s32 0, %v889
    %v891 = vrot.slane %v886, %v890
    %v957 = vunpack.c.l.b16 %v822
    %v958 = vunpack.c.l.b16 %v823
    %v959 = vunpack.c.l.b16 %v824
    %v960 = vunpack.c.l.b16 %v825
    %v961 = vunpack.c.l.b16 %v826
    %v962 = vunpack.c.l.b16 %v827
    %v963 = vunpack.c.l.b16 %v828
    %v964 = vunpack.c.l.b16 %v829
    %v965 = vunpack.c.l.b16 %v830
    %v966 = vunpack.c.l.b16 %v831
    %v967 = vunpack.c.l.b16 %v832
    %v968 = vunpack.c.l.b16 %v833
    %v969 = vunpack.c.l.b16 %v834
    %v970 = vunpack.c.l.b16 %v835
    %v971 = vunpack.c.l.b16 %v836
    %v972 = vunpack.c.l.b16 %v837
    %v973 = vunpack.c.l.b16 %v838
    %v974 = vunpack.c.l.b16 %v839
    %v975 = vunpack.c.l.b16 %v840
    %v976 = vunpack.c.l.b16 %v841
    %v977 = vunpack.c.l.b16 %v842
    %v978 = vunpack.c.l.b16 %v843
    %v979 = vunpack.c.l.b16 %v844
    %v980 = vunpack.c.l.b16 %v845
    %v981 = vunpack.c.l.b16 %v846
    %v982 = vunpack.c.l.b16 %v847
    %v983 = vunpack.c.l.b16 %v848
    %v984 = vunpack.c.l.b16 %v849
    %v985 = vunpack.c.l.b16 %v850
    %v986 = vunpack.c.l.b16 %v851
    %v987 = vunpack.c.l.b16 %v852
    %v988 = vunpack.c.l.b16 %v853
    %v989 = vunpack.c.l.b16 %v854
    %v990 = vunpack.c.l.b16 %v855
    %v991 = vunpack.c.l.b16 %v856
    %v992 = vunpack.c.l.b16 %v857
    %v993 = vunpack.c.l.b16 %v858
    %v994 = vunpack.c.l.b16 %v859
    %v995 = vunpack.c.l.b16 %v860
    %v996 = vunpack.c.l.b16 %v861
    %v997 = vunpack.c.l.b16 %v862
    %v998 = vunpack.c.l.b16 %v863
    %v999 = vunpack.c.l.b16 %v864
    %v1000 = vunpack.c.l.b16 %v865
    %v1001 = vunpack.c.l.b16 %v866
    %v1002 = vunpack.c.l.b16 %v867
    %v1003 = vunpack.c.l.b16 %v868
    %v1004 = vunpack.c.l.b16 %v869
    %v1005 = vunpack.c.l.b16 %v870
    %v1006 = vunpack.c.l.b16 %v871
    %v1007 = vunpack.c.l.b16 %v872
    %v1008 = vunpack.c.l.b16 %v873
    %v1009 = vunpack.c.l.b16 %v874
    %v1010 = vunpack.c.l.b16 %v875
    %v1011 = vunpack.c.l.b16 %v876
    %v1012 = vunpack.c.l.b16 %v877
    %v1013 = vunpack.c.l.b16 %v878
    %v1014 = vunpack.c.l.b16 %v879
    %v1015 = vunpack.c.l.b16 %v880
    %v1016 = vunpack.c.l.b16 %v881
    %v1017 = vunpack.c.l.b16 %v882
    %v1018 = vunpack.c.l.b16 %v883
    %v1019 = vunpack.c.l.b16 %v884
    %v1020 = vunpack.c.l.b16 %v885
    %v1021 = vpack.c.b16 %v958, %v957
    %v1022 = vpack.c.b16 %v960, %v959
    %v1023 = vpack.c.b16 %v962, %v961
    %v1024 = vpack.c.b16 %v964, %v963
    %v1025 = vpack.c.b16 %v966, %v965
    %v1026 = vpack.c.b16 %v968, %v967
    %v1027 = vpack.c.b16 %v970, %v969
    %v1028 = vpack.c.b16 %v972, %v971
    %v1029 = vpack.c.b16 %v974, %v973
    %v1030 = vpack.c.b16 %v976, %v975
    %v1031 = vpack.c.b16 %v978, %v977
    %v1032 = vpack.c.b16 %v980, %v979
    %v1033 = vpack.c.b16 %v982, %v981
    %v1034 = vpack.c.b16 %v984, %v983
    %v1035 = vpack.c.b16 %v986, %v985
    %v1036 = vpack.c.b16 %v988, %v987
    %v1037 = vpack.c.b16 %v990, %v989
    %v1038 = vpack.c.b16 %v992, %v991
    %v1039 = vpack.c.b16 %v994, %v993
    %v1040 = vpack.c.b16 %v996, %v995
    %v1041 = vpack.c.b16 %v998, %v997
    %v1042 = vpack.c.b16 %v1000, %v999
    %v1043 = vpack.c.b16 %v1002, %v1001
    %v1044 = vpack.c.b16 %v1004, %v1003
    %v1045 = vpack.c.b16 %v1006, %v1005
    %v1046 = vpack.c.b16 %v1008, %v1007
    %v1047 = vpack.c.b16 %v1010, %v1009
    %v1048 = vpack.c.b16 %v1012, %v1011
    %v1049 = vpack.c.b16 %v1014, %v1013
    %v1050 = vpack.c.b16 %v1016, %v1015
    %v1051 = vpack.c.b16 %v1018, %v1017
    %v1052 = vpack.c.b16 %v1020, %v1019
    %1085 = vmatprep.subr.bf16.mxu0 0
    %1086 = vmatpush1.bf16.msra.mxu0 %v1021
    %1087 = vmatprep.subr.bf16.mxu0 0
    %1088 = vmatpush1.bf16.msra.mxu0 %v1022
    %1089 = vmatprep.subr.bf16.mxu0 0
    %1090 = vmatpush1.bf16.msra.mxu0 %v1023
    %1091 = vmatprep.subr.bf16.mxu0 0
    %1092 = vmatpush1.bf16.msra.mxu0 %v1024
    %1093 = vmatprep.subr.bf16.mxu0 0
    %1094 = vmatpush1.bf16.msra.mxu0 %v1025
    %1095 = vmatprep.subr.bf16.mxu0 0
    %1096 = vmatpush1.bf16.msra.mxu0 %v1026
    %1097 = vmatprep.subr.bf16.mxu0 0
    %1098 = vmatpush1.bf16.msra.mxu0 %v1027
    %1099 = vmatprep.subr.bf16.mxu0 0
    %1100 = vmatpush1.bf16.msra.mxu0 %v1028
    %1101 = vmatprep.subr.bf16.mxu0 0
    %1102 = vmatpush1.bf16.msra.mxu0 %v1029
    %1103 = vmatprep.subr.bf16.mxu0 0
    %1104 = vmatpush1.bf16.msra.mxu0 %v1030
    %1105 = vmatprep.subr.bf16.mxu0 0
    %1106 = vmatpush1.bf16.msra.mxu0 %v1031
    %1107 = vmatprep.subr.bf16.mxu0 0
    %1108 = vmatpush1.bf16.msra.mxu0 %v1032
    %1109 = vmatprep.subr.bf16.mxu0 0
    %1110 = vmatpush1.bf16.msra.mxu0 %v1033
    %1111 = vmatprep.subr.bf16.mxu0 0
    %1112 = vmatpush1.bf16.msra.mxu0 %v1034
    %1113 = vmatprep.subr.bf16.mxu0 0
    %1114 = vmatpush1.bf16.msra.mxu0 %v1035
    %1115 = vmatprep.subr.bf16.mxu0 0
    %1116 = vmatpush1.bf16.msra.mxu0 %v1036
    %1117 = vmatprep.mubr.bf16.mxu0 %v819
    %1118 = vmatmul.mubr.bf16.gmra.mrb[0].mxu0 %v818
    %v1119 = vpop.f32.mrb[0].mxu0
    %v1120 = vadd.f32 %v891, %v1119
    %v1121 = vpop.f32.mrb[0].mxu0
    %v1122 = vpop.f32.mrb[0].mxu0
    %v1123 = vadd.f32 %v891, %v1122
    %v1124 = vpop.f32.mrb[0].mxu0
    %1125 = vdwg.mxu0
    %1126 = vmatprep.subr.bf16.mxu0 0
    %1127 = vmatpush1.bf16.msra.mxu0 %v1037
    %1128 = vmatprep.subr.bf16.mxu0 0
    %1129 = vmatpush1.bf16.msra.mxu0 %v1038
    %1130 = vmatprep.subr.bf16.mxu0 0
    %1131 = vmatpush1.bf16.msra.mxu0 %v1039
    %1132 = vmatprep.subr.bf16.mxu0 0
    %1133 = vmatpush1.bf16.msra.mxu0 %v1040
    %1134 = vmatprep.subr.bf16.mxu0 0
    %1135 = vmatpush1.bf16.msra.mxu0 %v1041
    %1136 = vmatprep.subr.bf16.mxu0 0
    %1137 = vmatpush1.bf16.msra.mxu0 %v1042
    %1138 = vmatprep.subr.bf16.mxu0 0
    %1139 = vmatpush1.bf16.msra.mxu0 %v1043
    %1140 = vmatprep.subr.bf16.mxu0 0
    %1141 = vmatpush1.bf16.msra.mxu0 %v1044
    %1142 = vmatprep.subr.bf16.mxu0 0
    %1143 = vmatpush1.bf16.msra.mxu0 %v1045
    %1144 = vmatprep.subr.bf16.mxu0 0
    %1145 = vmatpush1.bf16.msra.mxu0 %v1046
    %1146 = vmatprep.subr.bf16.mxu0 0
    %1147 = vmatpush1.bf16.msra.mxu0 %v1047
    %1148 = vmatprep.subr.bf16.mxu0 0
    %1149 = vmatpush1.bf16.msra.mxu0 %v1048
    %1150 = vmatprep.subr.bf16.mxu0 0
    %1151 = vmatpush1.bf16.msra.mxu0 %v1049
    %1152 = vmatprep.subr.bf16.mxu0 0
    %1153 = vmatpush1.bf16.msra.mxu0 %v1050
    %1154 = vmatprep.subr.bf16.mxu0 0
    %1155 = vmatpush1.bf16.msra.mxu0 %v1051
    %1156 = vmatprep.subr.bf16.mxu0 0
    %1157 = vmatpush1.bf16.msra.mxu0 %v1052
    %1158 = vmatprep.mubr.bf16.mxu0 %v821
    %1159 = vmatmul.mubr.bf16.gmra.mrb[0].mxu0 %v820
    %v1160 = vpop.f32.mrb[0].mxu0
    %v1161 = vadd.f32 %v1120, %v1160
    %v1162 = vpop.f32.mrb[0].mxu0
    %v1163 = vpop.f32.mrb[0].mxu0
    %v1164 = vadd.f32 %v1123, %v1163
    %v1165 = vpop.f32.mrb[0].mxu0
    %1166 = vdwg.mxu0
    %v1167 = vpack.c.bf16 %v1164, %v1161
    %v1168 = vld [vmem:[%s9] sm:$0xff]
    %v1169 = vld [vmem:[%s9 + $0x8] sm:$0xff]
    %v1170 = vld [vmem:[%s9 + $0x10] sm:$0xff]
    %v1171 = vld [vmem:[%s9 + $0x18] sm:$0xff]
    %v1172 = vld [vmem:[%s9 + $0x20] sm:$0xff]
    %v1173 = vld [vmem:[%s9 + $0x28] sm:$0xff]
    %v1174 = vld [vmem:[%s9 + $0x30] sm:$0xff]
    %v1175 = vld [vmem:[%s9 + $0x38] sm:$0xff]
    %v1176 = vld [vmem:[%s9 + $0x40] sm:$0xff]
    %v1177 = vld [vmem:[%s9 + $0x48] sm:$0xff]
    %v1178 = vld [vmem:[%s9 + $0x50] sm:$0xff]
    %v1179 = vld [vmem:[%s9 + $0x58] sm:$0xff]
    %v1180 = vld [vmem:[%s9 + $0x60] sm:$0xff]
    %v1181 = vld [vmem:[%s9 + $0x68] sm:$0xff]
    %v1182 = vld [vmem:[%s9 + $0x70] sm:$0xff]
    %v1183 = vld [vmem:[%s9 + $0x78] sm:$0xff]
    %v1184 = vld [vmem:[%s10] sm:$0xf]
    %v1186 = vlaneseq
    %v1187 = vshrl.u32 %v1186, 7
    %v1188 = vsub.s32 0, %v1187
    %v1189 = vrot.slane %v1184, %v1188
    %v1190 = vlaneseq
    %v1191 = vshrl.u32 %v1190, 7
    %v1192 = vsub.s32 1, %v1191
    %v1193 = vrot.slane %v1184, %v1192
    %v1194 = vlaneseq
    %v1195 = vshrl.u32 %v1194, 7
    %v1196 = vsub.s32 2, %v1195
    %v1197 = vrot.slane %v1184, %v1196
    %v1198 = vlaneseq
    %v1199 = vshrl.u32 %v1198, 7
    %v1200 = vsub.s32 3, %v1199
    %v1201 = vrot.slane %v1184, %v1200
    %v1222 = vunpack.c.l.b16 %v1168
    %v1223 = vunpack.c.h.b16 %v1168
    %v1224 = vunpack.c.l.b16 %v1169
    %v1225 = vunpack.c.h.b16 %v1169
    %v1226 = vunpack.c.l.b16 %v1170
    %v1227 = vunpack.c.h.b16 %v1170
    %v1228 = vunpack.c.l.b16 %v1171
    %v1229 = vunpack.c.h.b16 %v1171
    %v1230 = vunpack.c.l.b16 %v1172
    %v1231 = vunpack.c.h.b16 %v1172
    %v1232 = vunpack.c.l.b16 %v1173
    %v1233 = vunpack.c.h.b16 %v1173
    %v1234 = vunpack.c.l.b16 %v1174
    %v1235 = vunpack.c.h.b16 %v1174
    %v1236 = vunpack.c.l.b16 %v1175
    %v1237 = vunpack.c.h.b16 %v1175
    %v1238 = vunpack.c.l.b16 %v1176
    %v1239 = vunpack.c.h.b16 %v1176
    %v1240 = vunpack.c.l.b16 %v1177
    %v1241 = vunpack.c.h.b16 %v1177
    %v1242 = vunpack.c.l.b16 %v1178
    %v1243 = vunpack.c.h.b16 %v1178
    %v1244 = vunpack.c.l.b16 %v1179
    %v1245 = vunpack.c.h.b16 %v1179
    %v1246 = vunpack.c.l.b16 %v1180
    %v1247 = vunpack.c.h.b16 %v1180
    %v1248 = vunpack.c.l.b16 %v1181
    %v1249 = vunpack.c.h.b16 %v1181
    %v1250 = vunpack.c.l.b16 %v1182
    %v1251 = vunpack.c.h.b16 %v1182
    %v1252 = vunpack.c.l.b16 %v1183
    %v1253 = vunpack.c.h.b16 %v1183
    %v1254 = vpack.c.b16 %v1226, %v1222
    %v1255 = vpack.c.b16 %v1227, %v1223
    %v1256 = vpack.c.b16 %v1228, %v1224
    %v1257 = vpack.c.b16 %v1229, %v1225
    %v1258 = vpack.c.b16 %v1234, %v1230
    %v1259 = vpack.c.b16 %v1235, %v1231
    %v1260 = vpack.c.b16 %v1236, %v1232
    %v1261 = vpack.c.b16 %v1237, %v1233
    %v1262 = vpack.c.b16 %v1242, %v1238
    %v1263 = vpack.c.b16 %v1243, %v1239
    %v1264 = vpack.c.b16 %v1244, %v1240
    %v1265 = vpack.c.b16 %v1245, %v1241
    %v1266 = vpack.c.b16 %v1250, %v1246
    %v1267 = vpack.c.b16 %v1251, %v1247
    %v1268 = vpack.c.b16 %v1252, %v1248
    %v1269 = vpack.c.b16 %v1253, %v1249
    %vm1286 = vcmask 523264
    %v1288 = vsel %vm1286, %v1167, 0
    %1290 = vmatprep.subr.bf16.mxu0 %v1255
    %1291 = vmatpush1.bf16.msra.mxu0 %v1254
    %1292 = vmatprep.subr.bf16.mxu0 %v1259
    %1293 = vmatpush1.bf16.msra.mxu0 %v1258
    %1294 = vmatprep.subr.bf16.mxu0 %v1263
    %1295 = vmatpush1.bf16.msra.mxu0 %v1262
    %1296 = vmatprep.subr.bf16.mxu0 %v1267
    %1297 = vmatpush1.bf16.msra.mxu0 %v1266
    %1298 = vmatprep.subr.bf16.mxu0 0
    %1299 = vmatpush1.bf16.msra.mxu0 0
    %1300 = vmatprep.subr.bf16.mxu0 0
    %1301 = vmatpush1.bf16.msra.mxu0 0
    %1302 = vmatprep.subr.bf16.mxu0 0
    %1303 = vmatpush1.bf16.msra.mxu0 0
    %1304 = vmatprep.subr.bf16.mxu0 0
    %1305 = vmatpush1.bf16.msra.mxu0 0
    %1306 = vmatprep.subr.bf16.mxu0 0
    %1307 = vmatpush1.bf16.msra.mxu0 0
    %1308 = vmatprep.subr.bf16.mxu0 0
    %1309 = vmatpush1.bf16.msra.mxu0 0
    %1310 = vmatprep.subr.bf16.mxu0 0
    %1311 = vmatpush1.bf16.msra.mxu0 0
    %1312 = vmatprep.subr.bf16.mxu0 0
    %1313 = vmatpush1.bf16.msra.mxu0 0
    %1314 = vmatprep.subr.bf16.mxu0 0
    %1315 = vmatpush1.bf16.msra.mxu0 0
    %1316 = vmatprep.subr.bf16.mxu0 0
    %1317 = vmatpush1.bf16.msra.mxu0 0
    %1318 = vmatprep.subr.bf16.mxu0 0
    %1319 = vmatpush1.bf16.msra.mxu0 0
    %1320 = vmatprep.subr.bf16.mxu0 0
    %1321 = vmatpush1.bf16.msra.mxu0 0
    %1322 = vmatprep.mubr.bf16.mxu0 0
    %1323 = vmatmul.mubr.bf16.gmra.mrb[0].mxu0 %v1288
    %v1324 = vpop.f32.mrb[0].mxu0
    %v1325 = vadd.f32 %v1189, %v1324
    %v1326 = vpop.f32.mrb[0].mxu0
    %v1327 = vadd.f32 %v1193, %v1326
    %v1328 = vpop.f32.mrb[0].mxu0
    %v1329 = vadd.f32 %v1189, %v1328
    %v1330 = vpop.f32.mrb[0].mxu0
    %v1331 = vadd.f32 %v1193, %v1330
    %1332 = vdwg.mxu0
    %1333 = vmatprep.subr.bf16.mxu0 %v1257
    %1334 = vmatpush1.bf16.msra.mxu0 %v1256
    %1335 = vmatprep.subr.bf16.mxu0 %v1261
    %1336 = vmatpush1.bf16.msra.mxu0 %v1260
    %1337 = vmatprep.subr.bf16.mxu0 %v1265
    %1338 = vmatpush1.bf16.msra.mxu0 %v1264
    %1339 = vmatprep.subr.bf16.mxu0 %v1269
    %1340 = vmatpush1.bf16.msra.mxu0 %v1268
    %1341 = vmatprep.subr.bf16.mxu0 0
    %1342 = vmatpush1.bf16.msra.mxu0 0
    %1343 = vmatprep.subr.bf16.mxu0 0
    %1344 = vmatpush1.bf16.msra.mxu0 0
    %1345 = vmatprep.subr.bf16.mxu0 0
    %1346 = vmatpush1.bf16.msra.mxu0 0
    %1347 = vmatprep.subr.bf16.mxu0 0
    %1348 = vmatpush1.bf16.msra.mxu0 0
    %1349 = vmatprep.subr.bf16.mxu0 0
    %1350 = vmatpush1.bf16.msra.mxu0 0
    %1351 = vmatprep.subr.bf16.mxu0 0
    %1352 = vmatpush1.bf16.msra.mxu0 0
    %1353 = vmatprep.subr.bf16.mxu0 0
    %1354 = vmatpush1.bf16.msra.mxu0 0
    %1355 = vmatprep.subr.bf16.mxu0 0
    %1356 = vmatpush1.bf16.msra.mxu0 0
    %1357 = vmatprep.subr.bf16.mxu0 0
    %1358 = vmatpush1.bf16.msra.mxu0 0
    %1359 = vmatprep.subr.bf16.mxu0 0
    %1360 = vmatpush1.bf16.msra.mxu0 0
    %1361 = vmatprep.subr.bf16.mxu0 0
    %1362 = vmatpush1.bf16.msra.mxu0 0
    %1363 = vmatprep.subr.bf16.mxu0 0
    %1364 = vmatpush1.bf16.msra.mxu0 0
    %1365 = vmatprep.mubr.bf16.mxu0 0
    %1366 = vmatmul.mubr.bf16.gmra.mrb[0].mxu0 %v1288
    %v1367 = vpop.f32.mrb[0].mxu0
    %v1368 = vadd.f32 %v1197, %v1367
    %v1369 = vpop.f32.mrb[0].mxu0
    %v1370 = vadd.f32 %v1201, %v1369
    %v1371 = vpop.f32.mrb[0].mxu0
    %v1372 = vadd.f32 %v1197, %v1371
    %v1373 = vpop.f32.mrb[0].mxu0
    %v1374 = vadd.f32 %v1201, %v1373
    %1375 = vdwg.mxu0
    %v1376 = vmax.f32 %v1325, 0.0
    %v1377 = vmax.f32 %v1327, 0.0
    %v1378 = vmax.f32 %v1368, 0.0
    %v1379 = vmax.f32 %v1370, 0.0
    %v1380 = vmax.f32 %v1329, 0.0
    %v1381 = vmax.f32 %v1331, 0.0
    %v1382 = vmax.f32 %v1372, 0.0
    %v1383 = vmax.f32 %v1374, 0.0
    %v1384 = vpack.c.bf16 %v1380, %v1376
    %v1385 = vpack.c.bf16 %v1381, %v1377
    %v1386 = vpack.c.bf16 %v1382, %v1378
    %v1387 = vpack.c.bf16 %v1383, %v1379
    %v1388 = vld [vmem:[#allocation5] sm:$0xff]
    %v1389 = vld [vmem:[#allocation5 + $0x8] sm:$0xff]
    %v1390 = vld [vmem:[#allocation5 + $0x10] sm:$0xff]
    %v1391 = vld [vmem:[#allocation5 + $0x18] sm:$0xff]
    %v1392 = vld [vmem:[#allocation5 + $0x20] sm:$0xff]
    %v1393 = vld [vmem:[#allocation5 + $0x28] sm:$0xff]
    %v1394 = vld [vmem:[#allocation5 + $0x30] sm:$0xff]
    %v1395 = vld [vmem:[#allocation5 + $0x38] sm:$0xff]
    %v1396 = vld [vmem:[#allocation5 + $0x40] sm:$0xff]
    %v1397 = vld [vmem:[#allocation5 + $0x48] sm:$0xff]
    %v1398 = vld [vmem:[#allocation5 + $0x50] sm:$0xff]
    %v1399 = vld [vmem:[#allocation5 + $0x58] sm:$0xff]
    %v1400 = vld [vmem:[#allocation5 + $0x60] sm:$0xff]
    %v1401 = vld [vmem:[#allocation5 + $0x68] sm:$0xff]
    %v1402 = vld [vmem:[#allocation5 + $0x70] sm:$0xff]
    %v1403 = vld [vmem:[#allocation5 + $0x78] sm:$0xff]
    %v1404 = vld [vmem:[#allocation5 + $0x80] sm:$0xff]
    %v1405 = vld [vmem:[#allocation5 + $0x88] sm:$0xff]
    %v1406 = vld [vmem:[#allocation5 + $0x90] sm:$0xff]
    %v1407 = vld [vmem:[#allocation5 + $0x98] sm:$0xff]
    %v1408 = vld [vmem:[#allocation5 + $0xa0] sm:$0xff]
    %v1409 = vld [vmem:[#allocation5 + $0xa8] sm:$0xff]
    %v1410 = vld [vmem:[#allocation5 + $0xb0] sm:$0xff]
    %v1411 = vld [vmem:[#allocation5 + $0xb8] sm:$0xff]
    %v1412 = vld [vmem:[#allocation5 + $0xc0] sm:$0xff]
    %v1413 = vld [vmem:[#allocation5 + $0xc8] sm:$0xff]
    %v1414 = vld [vmem:[#allocation5 + $0xd0] sm:$0xff]
    %v1415 = vld [vmem:[#allocation5 + $0xd8] sm:$0xff]
    %v1416 = vld [vmem:[#allocation5 + $0xe0] sm:$0xff]
    %v1417 = vld [vmem:[#allocation5 + $0xe8] sm:$0xff]
    %v1418 = vld [vmem:[#allocation5 + $0xf0] sm:$0xff]
    %v1419 = vld [vmem:[#allocation5 + $0xf8] sm:$0xff]
    %v1420 = vld [vmem:[#allocation5 + $0x100] sm:$0xff]
    %v1421 = vld [vmem:[#allocation5 + $0x108] sm:$0xff]
    %v1422 = vld [vmem:[#allocation5 + $0x110] sm:$0xff]
    %v1423 = vld [vmem:[#allocation5 + $0x118] sm:$0xff]
    %v1424 = vld [vmem:[#allocation5 + $0x120] sm:$0xff]
    %v1425 = vld [vmem:[#allocation5 + $0x128] sm:$0xff]
    %v1426 = vld [vmem:[#allocation5 + $0x130] sm:$0xff]
    %v1427 = vld [vmem:[#allocation5 + $0x138] sm:$0xff]
    %v1428 = vld [vmem:[#allocation5 + $0x140] sm:$0xff]
    %v1429 = vld [vmem:[#allocation5 + $0x148] sm:$0xff]
    %v1430 = vld [vmem:[#allocation5 + $0x150] sm:$0xff]
    %v1431 = vld [vmem:[#allocation5 + $0x158] sm:$0xff]
    %v1432 = vld [vmem:[#allocation5 + $0x160] sm:$0xff]
    %v1433 = vld [vmem:[#allocation5 + $0x168] sm:$0xff]
    %v1434 = vld [vmem:[#allocation5 + $0x170] sm:$0xff]
    %v1435 = vld [vmem:[#allocation5 + $0x178] sm:$0xff]
    %v1436 = vld [vmem:[#allocation5 + $0x180] sm:$0xff]
    %v1437 = vld [vmem:[#allocation5 + $0x188] sm:$0xff]
    %v1438 = vld [vmem:[#allocation5 + $0x190] sm:$0xff]
    %v1439 = vld [vmem:[#allocation5 + $0x198] sm:$0xff]
    %v1440 = vld [vmem:[#allocation5 + $0x1a0] sm:$0xff]
    %v1441 = vld [vmem:[#allocation5 + $0x1a8] sm:$0xff]
    %v1442 = vld [vmem:[#allocation5 + $0x1b0] sm:$0xff]
    %v1443 = vld [vmem:[#allocation5 + $0x1b8] sm:$0xff]
    %v1444 = vld [vmem:[#allocation5 + $0x1c0] sm:$0xff]
    %v1445 = vld [vmem:[#allocation5 + $0x1c8] sm:$0xff]
    %v1446 = vld [vmem:[#allocation5 + $0x1d0] sm:$0xff]
    %v1447 = vld [vmem:[#allocation5 + $0x1d8] sm:$0xff]
    %v1448 = vld [vmem:[#allocation5 + $0x1e0] sm:$0xff]
    %v1449 = vld [vmem:[#allocation5 + $0x1e8] sm:$0xff]
    %v1450 = vld [vmem:[#allocation5 + $0x1f0] sm:$0xff]
    %v1451 = vld [vmem:[#allocation5 + $0x1f8] sm:$0xff]
    %v1452 = vld [vmem:[%s12] sm:$0x3]
    %v1454 = vlaneseq
    %v1455 = vshrl.u32 %v1454, 7
    %v1456 = vsub.s32 0, %v1455
    %v1457 = vrot.slane %v1452, %v1456
    %v1458 = vlaneseq
    %v1459 = vshrl.u32 %v1458, 7
    %v1460 = vsub.s32 1, %v1459
    %v1461 = vrot.slane %v1452, %v1460
    %v1528 = vunpack.c.l.b16 %v1388
    %v1529 = vunpack.c.h.b16 %v1388
    %v1530 = vunpack.c.l.b16 %v1389
    %v1531 = vunpack.c.h.b16 %v1389
    %v1532 = vunpack.c.l.b16 %v1390
    %v1533 = vunpack.c.h.b16 %v1390
    %v1534 = vunpack.c.l.b16 %v1391
    %v1535 = vunpack.c.h.b16 %v1391
    %v1536 = vunpack.c.l.b16 %v1392
    %v1537 = vunpack.c.h.b16 %v1392
    %v1538 = vunpack.c.l.b16 %v1393
    %v1539 = vunpack.c.h.b16 %v1393
    %v1540 = vunpack.c.l.b16 %v1394
    %v1541 = vunpack.c.h.b16 %v1394
    %v1542 = vunpack.c.l.b16 %v1395
    %v1543 = vunpack.c.h.b16 %v1395
    %v1544 = vunpack.c.l.b16 %v1396
    %v1545 = vunpack.c.h.b16 %v1396
    %v1546 = vunpack.c.l.b16 %v1397
    %v1547 = vunpack.c.h.b16 %v1397
    %v1548 = vunpack.c.l.b16 %v1398
    %v1549 = vunpack.c.h.b16 %v1398
    %v1550 = vunpack.c.l.b16 %v1399
    %v1551 = vunpack.c.h.b16 %v1399
    %v1552 = vunpack.c.l.b16 %v1400
    %v1553 = vunpack.c.h.b16 %v1400
    %v1554 = vunpack.c.l.b16 %v1401
    %v1555 = vunpack.c.h.b16 %v1401
    %v1556 = vunpack.c.l.b16 %v1402
    %v1557 = vunpack.c.h.b16 %v1402
    %v1558 = vunpack.c.l.b16 %v1403
    %v1559 = vunpack.c.h.b16 %v1403
    %v1560 = vunpack.c.l.b16 %v1404
    %v1561 = vunpack.c.h.b16 %v1404
    %v1562 = vunpack.c.l.b16 %v1405
    %v1563 = vunpack.c.h.b16 %v1405
    %v1564 = vunpack.c.l.b16 %v1406
    %v1565 = vunpack.c.h.b16 %v1406
    %v1566 = vunpack.c.l.b16 %v1407
    %v1567 = vunpack.c.h.b16 %v1407
    %v1568 = vunpack.c.l.b16 %v1408
    %v1569 = vunpack.c.h.b16 %v1408
    %v1570 = vunpack.c.l.b16 %v1409
    %v1571 = vunpack.c.h.b16 %v1409
    %v1572 = vunpack.c.l.b16 %v1410
    %v1573 = vunpack.c.h.b16 %v1410
    %v1574 = vunpack.c.l.b16 %v1411
    %v1575 = vunpack.c.h.b16 %v1411
    %v1576 = vunpack.c.l.b16 %v1412
    %v1577 = vunpack.c.h.b16 %v1412
    %v1578 = vunpack.c.l.b16 %v1413
    %v1579 = vunpack.c.h.b16 %v1413
    %v1580 = vunpack.c.l.b16 %v1414
    %v1581 = vunpack.c.h.b16 %v1414
    %v1582 = vunpack.c.l.b16 %v1415
    %v1583 = vunpack.c.h.b16 %v1415
    %v1584 = vunpack.c.l.b16 %v1416
    %v1585 = vunpack.c.h.b16 %v1416
    %v1586 = vunpack.c.l.b16 %v1417
    %v1587 = vunpack.c.h.b16 %v1417
    %v1588 = vunpack.c.l.b16 %v1418
    %v1589 = vunpack.c.h.b16 %v1418
    %v1590 = vunpack.c.l.b16 %v1419
    %v1591 = vunpack.c.h.b16 %v1419
    %v1592 = vunpack.c.l.b16 %v1420
    %v1593 = vunpack.c.h.b16 %v1420
    %v1594 = vunpack.c.l.b16 %v1421
    %v1595 = vunpack.c.h.b16 %v1421
    %v1596 = vunpack.c.l.b16 %v1422
    %v1597 = vunpack.c.h.b16 %v1422
    %v1598 = vunpack.c.l.b16 %v1423
    %v1599 = vunpack.c.h.b16 %v1423
    %v1600 = vunpack.c.l.b16 %v1424
    %v1601 = vunpack.c.h.b16 %v1424
    %v1602 = vunpack.c.l.b16 %v1425
    %v1603 = vunpack.c.h.b16 %v1425
    %v1604 = vunpack.c.l.b16 %v1426
    %v1605 = vunpack.c.h.b16 %v1426
    %v1606 = vunpack.c.l.b16 %v1427
    %v1607 = vunpack.c.h.b16 %v1427
    %v1608 = vunpack.c.l.b16 %v1428
    %v1609 = vunpack.c.h.b16 %v1428
    %v1610 = vunpack.c.l.b16 %v1429
    %v1611 = vunpack.c.h.b16 %v1429
    %v1612 = vunpack.c.l.b16 %v1430
    %v1613 = vunpack.c.h.b16 %v1430
    %v1614 = vunpack.c.l.b16 %v1431
    %v1615 = vunpack.c.h.b16 %v1431
    %v1616 = vunpack.c.l.b16 %v1432
    %v1617 = vunpack.c.h.b16 %v1432
    %v1618 = vunpack.c.l.b16 %v1433
    %v1619 = vunpack.c.h.b16 %v1433
    %v1620 = vunpack.c.l.b16 %v1434
    %v1621 = vunpack.c.h.b16 %v1434
    %v1622 = vunpack.c.l.b16 %v1435
    %v1623 = vunpack.c.h.b16 %v1435
    %v1624 = vunpack.c.l.b16 %v1436
    %v1625 = vunpack.c.h.b16 %v1436
    %v1626 = vunpack.c.l.b16 %v1437
    %v1627 = vunpack.c.h.b16 %v1437
    %v1628 = vunpack.c.l.b16 %v1438
    %v1629 = vunpack.c.h.b16 %v1438
    %v1630 = vunpack.c.l.b16 %v1439
    %v1631 = vunpack.c.h.b16 %v1439
    %v1632 = vunpack.c.l.b16 %v1440
    %v1633 = vunpack.c.h.b16 %v1440
    %v1634 = vunpack.c.l.b16 %v1441
    %v1635 = vunpack.c.h.b16 %v1441
    %v1636 = vunpack.c.l.b16 %v1442
    %v1637 = vunpack.c.h.b16 %v1442
    %v1638 = vunpack.c.l.b16 %v1443
    %v1639 = vunpack.c.h.b16 %v1443
    %v1640 = vunpack.c.l.b16 %v1444
    %v1641 = vunpack.c.h.b16 %v1444
    %v1642 = vunpack.c.l.b16 %v1445
    %v1643 = vunpack.c.h.b16 %v1445
    %v1644 = vunpack.c.l.b16 %v1446
    %v1645 = vunpack.c.h.b16 %v1446
    %v1646 = vunpack.c.l.b16 %v1447
    %v1647 = vunpack.c.h.b16 %v1447
    %v1648 = vunpack.c.l.b16 %v1448
    %v1649 = vunpack.c.h.b16 %v1448
    %v1650 = vunpack.c.l.b16 %v1449
    %v1651 = vunpack.c.h.b16 %v1449
    %v1652 = vunpack.c.l.b16 %v1450
    %v1653 = vunpack.c.h.b16 %v1450
    %v1654 = vunpack.c.l.b16 %v1451
    %v1655 = vunpack.c.h.b16 %v1451
    %v1656 = vpack.c.b16 %v1530, %v1528
    %v1657 = vpack.c.b16 %v1531, %v1529
    %v1658 = vpack.c.b16 %v1534, %v1532
    %v1659 = vpack.c.b16 %v1535, %v1533
    %v1660 = vpack.c.b16 %v1538, %v1536
    %v1661 = vpack.c.b16 %v1539, %v1537
    %v1662 = vpack.c.b16 %v1542, %v1540
    %v1663 = vpack.c.b16 %v1543, %v1541
    %v1664 = vpack.c.b16 %v1546, %v1544
    %v1665 = vpack.c.b16 %v1547, %v1545
    %v1666 = vpack.c.b16 %v1550, %v1548
    %v1667 = vpack.c.b16 %v1551, %v1549
    %v1668 = vpack.c.b16 %v1554, %v1552
    %v1669 = vpack.c.b16 %v1555, %v1553
    %v1670 = vpack.c.b16 %v1558, %v1556
    %v1671 = vpack.c.b16 %v1559, %v1557
    %v1672 = vpack.c.b16 %v1562, %v1560
    %v1673 = vpack.c.b16 %v1563, %v1561
    %v1674 = vpack.c.b16 %v1566, %v1564
    %v1675 = vpack.c.b16 %v1567, %v1565
    %v1676 = vpack.c.b16 %v1570, %v1568
    %v1677 = vpack.c.b16 %v1571, %v1569
    %v1678 = vpack.c.b16 %v1574, %v1572
    %v1679 = vpack.c.b16 %v1575, %v1573
    %v1680 = vpack.c.b16 %v1578, %v1576
    %v1681 = vpack.c.b16 %v1579, %v1577
    %v1682 = vpack.c.b16 %v1582, %v1580
    %v1683 = vpack.c.b16 %v1583, %v1581
    %v1684 = vpack.c.b16 %v1586, %v1584
    %v1685 = vpack.c.b16 %v1587, %v1585
    %v1686 = vpack.c.b16 %v1590, %v1588
    %v1687 = vpack.c.b16 %v1591, %v1589
    %v1688 = vpack.c.b16 %v1594, %v1592
    %v1689 = vpack.c.b16 %v1595, %v1593
    %v1690 = vpack.c.b16 %v1598, %v1596
    %v1691 = vpack.c.b16 %v1599, %v1597
    %v1692 = vpack.c.b16 %v1602, %v1600
    %v1693 = vpack.c.b16 %v1603, %v1601
    %v1694 = vpack.c.b16 %v1606, %v1604
    %v1695 = vpack.c.b16 %v1607, %v1605
    %v1696 = vpack.c.b16 %v1610, %v1608
    %v1697 = vpack.c.b16 %v1611, %v1609
    %v1698 = vpack.c.b16 %v1614, %v1612
    %v1699 = vpack.c.b16 %v1615, %v1613
    %v1700 = vpack.c.b16 %v1618, %v1616
    %v1701 = vpack.c.b16 %v1619, %v1617
    %v1702 = vpack.c.b16 %v1622, %v1620
    %v1703 = vpack.c.b16 %v1623, %v1621
    %v1704 = vpack.c.b16 %v1626, %v1624
    %v1705 = vpack.c.b16 %v1627, %v1625
    %v1706 = vpack.c.b16 %v1630, %v1628
    %v1707 = vpack.c.b16 %v1631, %v1629
    %v1708 = vpack.c.b16 %v1634, %v1632
    %v1709 = vpack.c.b16 %v1635, %v1633
    %v1710 = vpack.c.b16 %v1638, %v1636
    %v1711 = vpack.c.b16 %v1639, %v1637
    %v1712 = vpack.c.b16 %v1642, %v1640
    %v1713 = vpack.c.b16 %v1643, %v1641
    %v1714 = vpack.c.b16 %v1646, %v1644
    %v1715 = vpack.c.b16 %v1647, %v1645
    %v1716 = vpack.c.b16 %v1650, %v1648
    %v1717 = vpack.c.b16 %v1651, %v1649
    %v1718 = vpack.c.b16 %v1654, %v1652
    %v1719 = vpack.c.b16 %v1655, %v1653
    %1784 = vmatprep.subr.bf16.mxu0 %v1657
    %1785 = vmatpush1.bf16.msra.mxu0 %v1656
    %1786 = vmatprep.subr.bf16.mxu0 %v1659
    %1787 = vmatpush1.bf16.msra.mxu0 %v1658
    %1788 = vmatprep.subr.bf16.mxu0 %v1661
    %1789 = vmatpush1.bf16.msra.mxu0 %v1660
    %1790 = vmatprep.subr.bf16.mxu0 %v1663
    %1791 = vmatpush1.bf16.msra.mxu0 %v1662
    %1792 = vmatprep.subr.bf16.mxu0 %v1665
    %1793 = vmatpush1.bf16.msra.mxu0 %v1664
    %1794 = vmatprep.subr.bf16.mxu0 %v1667
    %1795 = vmatpush1.bf16.msra.mxu0 %v1666
    %1796 = vmatprep.subr.bf16.mxu0 %v1669
    %1797 = vmatpush1.bf16.msra.mxu0 %v1668
    %1798 = vmatprep.subr.bf16.mxu0 %v1671
    %1799 = vmatpush1.bf16.msra.mxu0 %v1670
    %1800 = vmatprep.subr.bf16.mxu0 %v1673
    %1801 = vmatpush1.bf16.msra.mxu0 %v1672
    %1802 = vmatprep.subr.bf16.mxu0 %v1675
    %1803 = vmatpush1.bf16.msra.mxu0 %v1674
    %1804 = vmatprep.subr.bf16.mxu0 %v1677
    %1805 = vmatpush1.bf16.msra.mxu0 %v1676
    %1806 = vmatprep.subr.bf16.mxu0 %v1679
    %1807 = vmatpush1.bf16.msra.mxu0 %v1678
    %1808 = vmatprep.subr.bf16.mxu0 %v1681
    %1809 = vmatpush1.bf16.msra.mxu0 %v1680
    %1810 = vmatprep.subr.bf16.mxu0 %v1683
    %1811 = vmatpush1.bf16.msra.mxu0 %v1682
    %1812 = vmatprep.subr.bf16.mxu0 %v1685
    %1813 = vmatpush1.bf16.msra.mxu0 %v1684
    %1814 = vmatprep.subr.bf16.mxu0 %v1687
    %1815 = vmatpush1.bf16.msra.mxu0 %v1686
    %1816 = vmatprep.mubr.bf16.mxu0 %v1385
    %1817 = vmatmul.mubr.bf16.gmra.mrb[0].mxu0 %v1384
    %v1818 = vpop.f32.mrb[0].mxu0
    %v1819 = vadd.f32 %v1457, %v1818
    %v1820 = vpop.f32.mrb[0].mxu0
    %v1821 = vadd.f32 %v1461, %v1820
    %v1822 = vpop.f32.mrb[0].mxu0
    %v1823 = vadd.f32 %v1457, %v1822
    %v1824 = vpop.f32.mrb[0].mxu0
    %v1825 = vadd.f32 %v1461, %v1824
    %1826 = vdwg.mxu0
    %1827 = vmatprep.subr.bf16.mxu0 %v1689
    %1828 = vmatpush1.bf16.msra.mxu0 %v1688
    %1829 = vmatprep.subr.bf16.mxu0 %v1691
    %1830 = vmatpush1.bf16.msra.mxu0 %v1690
    %1831 = vmatprep.subr.bf16.mxu0 %v1693
    %1832 = vmatpush1.bf16.msra.mxu0 %v1692
    %1833 = vmatprep.subr.bf16.mxu0 %v1695
    %1834 = vmatpush1.bf16.msra.mxu0 %v1694
    %1835 = vmatprep.subr.bf16.mxu0 %v1697
    %1836 = vmatpush1.bf16.msra.mxu0 %v1696
    %1837 = vmatprep.subr.bf16.mxu0 %v1699
    %1838 = vmatpush1.bf16.msra.mxu0 %v1698
    %1839 = vmatprep.subr.bf16.mxu0 %v1701
    %1840 = vmatpush1.bf16.msra.mxu0 %v1700
    %1841 = vmatprep.subr.bf16.mxu0 %v1703
    %1842 = vmatpush1.bf16.msra.mxu0 %v1702
    %1843 = vmatprep.subr.bf16.mxu0 %v1705
    %1844 = vmatpush1.bf16.msra.mxu0 %v1704
    %1845 = vmatprep.subr.bf16.mxu0 %v1707
    %1846 = vmatpush1.bf16.msra.mxu0 %v1706
    %1847 = vmatprep.subr.bf16.mxu0 %v1709
    %1848 = vmatpush1.bf16.msra.mxu0 %v1708
    %1849 = vmatprep.subr.bf16.mxu0 %v1711
    %1850 = vmatpush1.bf16.msra.mxu0 %v1710
    %1851 = vmatprep.subr.bf16.mxu0 %v1713
    %1852 = vmatpush1.bf16.msra.mxu0 %v1712
    %1853 = vmatprep.subr.bf16.mxu0 %v1715
    %1854 = vmatpush1.bf16.msra.mxu0 %v1714
    %1855 = vmatprep.subr.bf16.mxu0 %v1717
    %1856 = vmatpush1.bf16.msra.mxu0 %v1716
    %1857 = vmatprep.subr.bf16.mxu0 %v1719
    %1858 = vmatpush1.bf16.msra.mxu0 %v1718
    %1859 = vmatprep.mubr.bf16.mxu0 %v1387
    %1860 = vmatmul.mubr.bf16.gmra.mrb[0].mxu0 %v1386
    %v1861 = vpop.f32.mrb[0].mxu0
    %v1862 = vadd.f32 %v1819, %v1861
    %v1863 = vpop.f32.mrb[0].mxu0
    %v1864 = vadd.f32 %v1821, %v1863
    %v1865 = vpop.f32.mrb[0].mxu0
    %v1866 = vadd.f32 %v1823, %v1865
    %v1867 = vpop.f32.mrb[0].mxu0
    %v1868 = vadd.f32 %v1825, %v1867
    %1869 = vdwg.mxu0
    %v1870 = vmax.f32 %v1862, 0.0
    %v1871 = vmax.f32 %v1864, 0.0
    %v1872 = vmax.f32 %v1866, 0.0
    %v1873 = vmax.f32 %v1868, 0.0
    %v1874 = vpack.c.bf16 %v1872, %v1870
    %v1875 = vpack.c.bf16 %v1873, %v1871
    %v1876 = vld [vmem:[%s13] sm:$0xf]
    %v1877 = vld [vmem:[%s13 + $0x4] sm:$0xf]
    %v1878 = vld [vmem:[%s13 + $0x8] sm:$0xf]
    %v1879 = vld [vmem:[%s13 + $0xc] sm:$0xf]
    %v1880 = vld [vmem:[%s13 + $0x10] sm:$0xf]
    %v1881 = vld [vmem:[%s13 + $0x14] sm:$0xf]
    %v1882 = vld [vmem:[%s13 + $0x18] sm:$0xf]
    %v1883 = vld [vmem:[%s13 + $0x1c] sm:$0xf]
    %v1884 = vld [vmem:[%s13 + $0x20] sm:$0xf]
    %v1885 = vld [vmem:[%s13 + $0x24] sm:$0xf]
    %v1886 = vld [vmem:[%s13 + $0x28] sm:$0xf]
    %v1887 = vld [vmem:[%s13 + $0x2c] sm:$0xf]
    %v1888 = vld [vmem:[%s13 + $0x30] sm:$0xf]
    %v1889 = vld [vmem:[%s13 + $0x34] sm:$0xf]
    %v1890 = vld [vmem:[%s13 + $0x38] sm:$0xf]
    %v1891 = vld [vmem:[%s13 + $0x3c] sm:$0xf]
    %v1892 = vld [vmem:[%s13 + $0x40] sm:$0xf]
    %v1893 = vld [vmem:[%s13 + $0x44] sm:$0xf]
    %v1894 = vld [vmem:[%s13 + $0x48] sm:$0xf]
    %v1895 = vld [vmem:[%s13 + $0x4c] sm:$0xf]
    %v1896 = vld [vmem:[%s13 + $0x50] sm:$0xf]
    %v1897 = vld [vmem:[%s13 + $0x54] sm:$0xf]
    %v1898 = vld [vmem:[%s13 + $0x58] sm:$0xf]
    %v1899 = vld [vmem:[%s13 + $0x5c] sm:$0xf]
    %v1900 = vld [vmem:[%s13 + $0x60] sm:$0xf]
    %v1901 = vld [vmem:[%s13 + $0x64] sm:$0xf]
    %v1902 = vld [vmem:[%s13 + $0x68] sm:$0xf]
    %v1903 = vld [vmem:[%s13 + $0x6c] sm:$0xf]
    %v1904 = vld [vmem:[%s13 + $0x70] sm:$0xf]
    %v1905 = vld [vmem:[%s13 + $0x74] sm:$0xf]
    %v1906 = vld [vmem:[%s13 + $0x78] sm:$0xf]
    %v1907 = vld [vmem:[%s13 + $0x7c] sm:$0xf]
    %v1908 = vld [vmem:[%s14] sm:$0x1]
    %v1910 = vlaneseq
    %v1911 = vshrl.u32 %v1910, 7
    %v1912 = vsub.s32 0, %v1911
    %v1913 = vrot.slane %v1908, %v1912
    %v1947 = vunpack.c.l.b16 %v1876
    %v1948 = vunpack.c.l.b16 %v1877
    %v1949 = vunpack.c.l.b16 %v1878
    %v1950 = vunpack.c.l.b16 %v1879
    %v1951 = vunpack.c.l.b16 %v1880
    %v1952 = vunpack.c.l.b16 %v1881
    %v1953 = vunpack.c.l.b16 %v1882
    %v1954 = vunpack.c.l.b16 %v1883
    %v1955 = vunpack.c.l.b16 %v1884
    %v1956 = vunpack.c.l.b16 %v1885
    %v1957 = vunpack.c.l.b16 %v1886
    %v1958 = vunpack.c.l.b16 %v1887
    %v1959 = vunpack.c.l.b16 %v1888
    %v1960 = vunpack.c.l.b16 %v1889
    %v1961 = vunpack.c.l.b16 %v1890
    %v1962 = vunpack.c.l.b16 %v1891
    %v1963 = vunpack.c.l.b16 %v1892
    %v1964 = vunpack.c.l.b16 %v1893
    %v1965 = vunpack.c.l.b16 %v1894
    %v1966 = vunpack.c.l.b16 %v1895
    %v1967 = vunpack.c.l.b16 %v1896
    %v1968 = vunpack.c.l.b16 %v1897
    %v1969 = vunpack.c.l.b16 %v1898
    %v1970 = vunpack.c.l.b16 %v1899
    %v1971 = vunpack.c.l.b16 %v1900
    %v1972 = vunpack.c.l.b16 %v1901
    %v1973 = vunpack.c.l.b16 %v1902
    %v1974 = vunpack.c.l.b16 %v1903
    %v1975 = vunpack.c.l.b16 %v1904
    %v1976 = vunpack.c.l.b16 %v1905
    %v1977 = vunpack.c.l.b16 %v1906
    %v1978 = vunpack.c.l.b16 %v1907
    %v1979 = vpack.c.b16 %v1948, %v1947
    %v1980 = vpack.c.b16 %v1950, %v1949
    %v1981 = vpack.c.b16 %v1952, %v1951
    %v1982 = vpack.c.b16 %v1954, %v1953
    %v1983 = vpack.c.b16 %v1956, %v1955
    %v1984 = vpack.c.b16 %v1958, %v1957
    %v1985 = vpack.c.b16 %v1960, %v1959
    %v1986 = vpack.c.b16 %v1962, %v1961
    %v1987 = vpack.c.b16 %v1964, %v1963
    %v1988 = vpack.c.b16 %v1966, %v1965
    %v1989 = vpack.c.b16 %v1968, %v1967
    %v1990 = vpack.c.b16 %v1970, %v1969
    %v1991 = vpack.c.b16 %v1972, %v1971
    %v1992 = vpack.c.b16 %v1974, %v1973
    %v1993 = vpack.c.b16 %v1976, %v1975
    %v1994 = vpack.c.b16 %v1978, %v1977
    %2011 = vmatprep.subr.bf16.mxu0 0
    %2012 = vmatpush1.bf16.msra.mxu0 %v1979
    %2013 = vmatprep.subr.bf16.mxu0 0
    %2014 = vmatpush1.bf16.msra.mxu0 %v1980
    %2015 = vmatprep.subr.bf16.mxu0 0
    %2016 = vmatpush1.bf16.msra.mxu0 %v1981
    %2017 = vmatprep.subr.bf16.mxu0 0
    %2018 = vmatpush1.bf16.msra.mxu0 %v1982
    %2019 = vmatprep.subr.bf16.mxu0 0
    %2020 = vmatpush1.bf16.msra.mxu0 %v1983
    %2021 = vmatprep.subr.bf16.mxu0 0
    %2022 = vmatpush1.bf16.msra.mxu0 %v1984
    %2023 = vmatprep.subr.bf16.mxu0 0
    %2024 = vmatpush1.bf16.msra.mxu0 %v1985
    %2025 = vmatprep.subr.bf16.mxu0 0
    %2026 = vmatpush1.bf16.msra.mxu0 %v1986
    %2027 = vmatprep.subr.bf16.mxu0 0
    %2028 = vmatpush1.bf16.msra.mxu0 %v1987
    %2029 = vmatprep.subr.bf16.mxu0 0
    %2030 = vmatpush1.bf16.msra.mxu0 %v1988
    %2031 = vmatprep.subr.bf16.mxu0 0
    %2032 = vmatpush1.bf16.msra.mxu0 %v1989
    %2033 = vmatprep.subr.bf16.mxu0 0
    %2034 = vmatpush1.bf16.msra.mxu0 %v1990
    %2035 = vmatprep.subr.bf16.mxu0 0
    %2036 = vmatpush1.bf16.msra.mxu0 %v1991
    %2037 = vmatprep.subr.bf16.mxu0 0
    %2038 = vmatpush1.bf16.msra.mxu0 %v1992
    %2039 = vmatprep.subr.bf16.mxu0 0
    %2040 = vmatpush1.bf16.msra.mxu0 %v1993
    %2041 = vmatprep.subr.bf16.mxu0 0
    %2042 = vmatpush1.bf16.msra.mxu0 %v1994
    %2043 = vmatprep.mubr.bf16.mxu0 %v1875
    %2044 = vmatmul.mubr.bf16.gmra.mrb[0].mxu0 %v1874
    %v2045 = vpop.f32.mrb[0].mxu0
    %v2046 = vadd.f32 %v1913, %v2045
    %v2047 = vpop.f32.mrb[0].mxu0
    %v2048 = vpop.f32.mrb[0].mxu0
    %v2049 = vadd.f32 %v1913, %v2048
    %v2050 = vpop.f32.mrb[0].mxu0
    %2051 = vdwg.mxu0
    %v2052 = vmax.f32 %v2046, 0.0
    %v2053 = vmax.f32 %v2049, 0.0
    %v2054 = vpack.c.bf16 %v2053, %v2052
    %v2055 = vld [vmem:[%s15] sm:$0x1]
    %v2056 = vld [vmem:[#allocation2] sm:$0x1]
    %2058 = vset.pattern.permute.xlu0 0
    %2059 = vperm.xlu0 %2058, %v2056
    %v2060 = vpop.permute.xlu0 %2059
    %v2062 = vlaneseq
    %v2063 = vshrl.u32 %v2062, 7
    %v2064 = vsub.s32 0, %v2063
    %v2065 = vrot.slane %v2060, %v2064
    %2066 = vmatprep.subr.bf16.mxu0 0
    %2067 = vmatpush1.bf16.xpose.msra.mxu0 %v2054
    %2068 = vmatprep.subr.bf16.mxu0 0
    %2069 = vmatpush1.bf16.xpose.msra.mxu0 0
    %2070 = vmatprep.subr.bf16.mxu0 0
    %2071 = vmatpush1.bf16.xpose.msra.mxu0 0
    %2072 = vmatprep.subr.bf16.mxu0 0
    %2073 = vmatpush1.bf16.xpose.msra.mxu0 0
    %2074 = vmatprep.subr.bf16.mxu0 0
    %2075 = vmatpush1.bf16.xpose.msra.mxu0 0
    %2076 = vmatprep.subr.bf16.mxu0 0
    %2077 = vmatpush1.bf16.xpose.msra.mxu0 0
    %2078 = vmatprep.subr.bf16.mxu0 0
    %2079 = vmatpush1.bf16.xpose.msra.mxu0 0
    %2080 = vmatprep.subr.bf16.mxu0 0
    %2081 = vmatpush1.bf16.xpose.msra.mxu0 0
    %2082 = vmatprep.subr.bf16.mxu0 0
    %2083 = vmatpush1.bf16.xpose.msra.mxu0 0
    %2084 = vmatprep.subr.bf16.mxu0 0
    %2085 = vmatpush1.bf16.xpose.msra.mxu0 0
    %2086 = vmatprep.subr.bf16.mxu0 0
    %2087 = vmatpush1.bf16.xpose.msra.mxu0 0
    %2088 = vmatprep.subr.bf16.mxu0 0
    %2089 = vmatpush1.bf16.xpose.msra.mxu0 0
    %2090 = vmatprep.subr.bf16.mxu0 0
    %2091 = vmatpush1.bf16.xpose.msra.mxu0 0
    %2092 = vmatprep.subr.bf16.mxu0 0
    %2093 = vmatpush1.bf16.xpose.msra.mxu0 0
    %2094 = vmatprep.subr.bf16.mxu0 0
    %2095 = vmatpush1.bf16.xpose.msra.mxu0 0
    %2096 = vmatprep.subr.bf16.mxu0 0
    %2097 = vmatpush1.bf16.xpose.msra.mxu0 0
    %2098 = vmatprep.mubr.bf16.mxu0 0
    %2099 = vmatmul.mubr.bf16.gmra.mrb[0].mxu0 %v2055
    %v2100 = vpop.f32.mrb[0].mxu0
    %v2101 = vadd.f32 %v2065, %v2100
    %v2102 = vpop.f32.mrb[0].mxu0
    %v2103 = vpop.f32.mrb[0].mxu0
    %v2104 = vpop.f32.mrb[0].mxu0
    %2105 = vdwg.mxu0
    %v2106 = vsub.f32 0.0, %v2101
    %v2107 = vmul.f32 %v2106, 1.442695
    %v2108 = vpow.pop %v2107
    %v2109 = vadd.f32 %v2108, 1.0
    %v2110 = vrcp.pop %v2109
    %vm2111 = vcmask 122880
    %2112 = vst.msk [vmem:[%s17] sm:$0x1] %vm2111, %v2110
    // Predicated region
    $region78: #{gan_forward.1} parent=1 // pred_check
      _
    $region79: #{gan_forward.1} parent=1 // pred_check_branch
      %2114 = sbr.rel (0) target = $region81
    $region80: #{gan_forward.1} parent=1 // pred_region
      _
    $region81: #{gan_forward.1} parent=1 // pred_fallthru
      _
    // Predicated region
    $region82: #{gan_forward.1} parent=1 // pred_check
      _
    $region83: #{gan_forward.1} parent=1 // pred_check_branch
      %2116 = sbr.rel (0) target = $region85
    $region84: #{gan_forward.1} parent=1 // pred_region
      _
    $region85: #{gan_forward.1} parent=1 // pred_fallthru
      _
    %2117 = vsyncpa [#allocation4], 1
    %2118 = vsyncpa [#allocation6], 1

</llo_original>
